<compile_context>
chip_gen: v7x
topology: tpu7x:2x2x1
jax: 0.10.0
libtpu: 0.0.40
codegen_flags: <defaults>
</compile_context>

<pallas_src>
import functools
import operator

import jax
import jax.numpy as jnp
from jax.experimental import pallas as pl
from jax.experimental.pallas import tpu as pltpu

H1, H2 = 400, 300        # logical layer widths (as in the PyTorch module)
H1P, H2P = 512, 384      # zero-padded to multiples of 128 (full-lane vregs)


def _ru(v, m):
    return ((v + m - 1) // m) * m


def _critic_dense_kernel(x_ref, u_ref, w1_ref, w2x_ref, sp_ref, o_ref, *,
                         action_dim):
    """One batch-tile of the critic forward.

    x_ref  : (tm, state_dim) bf16  — observation tile (streamed bf16)
    u_ref  : (tm, action_dim) f32  — action tile
    w1_ref : (state_dim, 512) bf16 — l1 weight (in, out), zero-padded cols
    w2x_ref: (512, 384)      bf16  — l2 weight rows for h1 (zero-padded)
    sp_ref : (8, 512)        f32   — packed small params:
             row 0        : b1 (400, zero-padded)
             row 1        : b2 (300, zero-padded)
             rows 2..2+A-1: W2 rows for u, i.e. w2u (A, 300, zero-padded)
             row 2+A      : w3.T (300, zero-padded)
             row 3+A      : b3 at col 0
    o_ref  : (1, tm) f32           — lane-dense output row for this tile
    """
    A = action_dim
    b1 = sp_ref[0:1, :]                    # (1, 512)
    b2 = sp_ref[1:2, 0:H2P]                # (1, 384)
    w3 = sp_ref[2 + A:3 + A, 0:H2P]        # (1, 384)
    b3 = sp_ref[3 + A:4 + A, 0:1]          # (1, 1)

    # ---- l1: relu(x @ W1 + b1) — bf16 MXU matmul, f32 accumulation ----
    h1 = jnp.dot(x_ref[...], w1_ref[...], preferred_element_type=jnp.float32)
    h1 = jnp.maximum(h1 + b1, 0.0)

    # ---- l2: relu(cat([h1, u]) @ W2 + b2)
    #        = relu(h1 @ W2[:400] + u @ W2[400:] + b2) ----
    h2 = jnp.dot(h1.astype(jnp.bfloat16), w2x_ref[...],
                 preferred_element_type=jnp.float32)
    u = u_ref[...]
    for a in range(A):                      # static unroll; K=A tiny -> VPU FMAs
        h2 = h2 + u[:, a:a + 1] * sp_ref[2 + a:3 + a, 0:H2P]
    h2 = jnp.maximum(h2 + b2, 0.0)

    # ---- l3: N = 1 -> elementwise mul + lane reduction; lane-dense store ----
    q = jnp.sum(h2 * w3, axis=-1)           # (tm,)
    o_ref[...] = q[None, :] + b3            # (1, tm)


def critic_dense_forward(x, u, params, *, block_m=512):
    """x: (B, state_dim) bf16 (preferred) or f32, u: (B, A) f32 -> (B, 1) f32."""
    w1_bf, w2x_bf, sp = params
    B, state_dim = x.shape
    A = u.shape[1]

    if x.dtype != jnp.bfloat16:
        # Prefer producing x in bf16 upstream (e.g. in the replay buffer);
        # casting here adds an extra f32-read/bf16-write HBM pass in XLA.
        x = x.astype(jnp.bfloat16)
    u = u.astype(jnp.float32)

    # Batch tiling:
    #  * B <= 128 : one sublane-padded tile, single grid step.
    #  * B  > 128 : >= 2 tiles of 128-row multiples (v7x megacore shards the
    #    "parallel" axis over both TensorCores), capped at block_m to bound
    #    VMEM and amortize the ~0.35 us per-step overhead.
    if B <= 128:
        tm = max(16, _ru(B, 16))
    else:
        tm = min(block_m, _ru((B + 1) // 2, 128))
    b_pad = _ru(B, tm)
    if b_pad != B:
        x = jnp.pad(x, ((0, b_pad - B), (0, 0)))
        u = jnp.pad(u, ((0, b_pad - B), (0, 0)))
    grid = (b_pad // tm,)

    kernel = functools.partial(_critic_dense_kernel, action_dim=A)
    resident = dict(pipeline_mode=pl.Buffered(1))  # grid-invariant -> 1 buffer
    out = pl.pallas_call(
        kernel,
        out_shape=jax.ShapeDtypeStruct((1, b_pad), jnp.float32),
        grid_spec=pltpu.PrefetchScalarGridSpec(
            num_scalar_prefetch=0,
            grid=grid,
            in_specs=[
                pl.BlockSpec((tm, state_dim), lambda i: (i, 0)),   # x tile bf16
                pl.BlockSpec((tm, A), lambda i: (i, 0)),           # u tile f32
                # Weights: constant block index -> VMEM-resident, 1 buffer.
                pl.BlockSpec((state_dim, H1P), lambda i: (0, 0), **resident),
                pl.BlockSpec((H1P, H2P), lambda i: (0, 0), **resident),
                pl.BlockSpec(sp.shape, lambda i: (0, 0), **resident),
            ],
            out_specs=pl.BlockSpec((1, tm), lambda i: (0, i)),
        ),
        compiler_params=pltpu.CompilerParams(
            dimension_semantics=("parallel",),
            vmem_limit_bytes=32 * 1024 * 1024),
    )(x, u, w1_bf, w2x_bf, sp)
    return out[0, :B][:, None]


def init_params(key, state_dim_flat, action_dim):
    """Mimics PyTorch nn.Linear default init U(-1/sqrt(fan_in), 1/sqrt(fan_in)).
    Weights stored pre-transposed (in, out); big weights zero-padded to
    128-lane multiples and cast to bf16; small params packed into one f32
    array so the kernel issues 5 DMAs total."""
    assert action_dim <= 4, "sp packing assumes 4 + action_dim <= 8 rows"
    k1, k2, k3, k4, k5, k6 = jax.random.split(key, 6)

    def uinit(k, shape, fan_in):
        bound = 1.0 / jnp.sqrt(jnp.float32(fan_in))
        return jax.random.uniform(k, shape, jnp.float32, -bound, bound)

    in2 = H1 + action_dim
    w1 = uinit(k1, (state_dim_flat, H1), state_dim_flat)
    b1 = uinit(k2, (H1,), state_dim_flat)
    w2 = uinit(k3, (in2, H2), in2)          # rows 0:400 -> h1, rows 400: -> u
    b2 = uinit(k4, (H2,), in2)
    w3 = uinit(k5, (H2, 1), H2)
    b3 = uinit(k6, (1,), H2)

    # Zero-pad the big weights to full 128-lane tiles, store bf16.
    # TODO(synk): generation-aware int8 (v5e/v6e) / fp8 (v7x) weight
    # quantization with per-column scales to halve the fixed weight DMA.
    w1p = jnp.zeros((state_dim_flat, H1P), jnp.float32).at[:, :H1].set(w1)
    w2xp = jnp.zeros((H1P, H2P), jnp.float32).at[:H1, :H2].set(w2[:H1, :])
    w1_bf = w1p.astype(jnp.bfloat16)
    w2x_bf = w2xp.astype(jnp.bfloat16)
    w2u = w2[H1:, :]                         # (A, 300), kept f32 (tiny)

    sp = jnp.zeros((8, H1P), jnp.float32)
    sp = sp.at[0, :H1].set(b1)
    sp = sp.at[1, :H2].set(b2)
    sp = sp.at[2:2 + action_dim, :H2].set(w2u)
    sp = sp.at[2 + action_dim, :H2].set(w3[:, 0])
    sp = sp.at[3 + action_dim, 0].set(b3[0])
    return (w1_bf, w2x_bf, sp)


def reference_forward(x_bf, u, params, action_dim):
    """Plain-JAX reference mirroring the kernel numerics (bf16 x/weights,
    f32 accumulation); mathematically identical to the PyTorch module."""
    w1_bf, w2x_bf, sp = params
    A = action_dim
    b1 = sp[0:1, :]
    b2 = sp[1:2, :H2P]
    w2u = sp[2:2 + A, :H2P]
    w3 = sp[2 + A:3 + A, :H2P]
    b3 = sp[3 + A, 0]

    h1 = jnp.maximum(
        jnp.dot(x_bf, w1_bf, preferred_element_type=jnp.float32) + b1, 0.0)
    h2 = (jnp.dot(h1.astype(jnp.bfloat16), w2x_bf,
                  preferred_element_type=jnp.float32)
          + u.astype(jnp.float32) @ w2u + b2)
    h2 = jnp.maximum(h2, 0.0)
    return jnp.sum(h2 * w3, axis=-1, keepdims=True) + b3


if __name__ == "__main__":
    key = jax.random.PRNGKey(0)
    kx, ku, kp = jax.random.split(key, 3)

    # state_dim = (4, 16, 16) -> flattened 1024; action_dim = 2; batch = 2
    B = 2
    state_shape = (4, 16, 16)
    state_dim_flat = functools.reduce(operator.mul, state_shape, 1)
    action_dim = 2

    x_nchw = jax.random.normal(kx, (B,) + state_shape, dtype=jnp.float32)
    u = jax.random.normal(ku, (B, action_dim), dtype=jnp.float32)
    params = init_params(kp, state_dim_flat, action_dim)

    # Producer-side flatten + bf16 (what the wrapper expects to stream).
    x_flat = x_nchw.reshape(B, state_dim_flat).astype(jnp.bfloat16)

    out = critic_dense_forward(x_flat, u, params)
    out = jax.block_until_ready(out)

    ref = reference_forward(x_flat, u, params, action_dim)
    assert out.shape == (B, 1), out.shape
    assert jnp.allclose(out, ref, atol=1e-2, rtol=1e-2), (out, ref)

    print("KERNEL_OK")
</pallas_src>

<mosaic_0001>
module attributes {stable_mosaic.version = 11 : i64} {
  func.func @_critic_dense_kernel(%arg0: i32, %arg1: memref<16x1024xbf16, #tpu.memory_space<vmem>>, %arg2: memref<16x2xf32, #tpu.memory_space<vmem>>, %arg3: memref<1024x512xbf16, #tpu.memory_space<vmem>>, %arg4: memref<512x384xbf16, #tpu.memory_space<vmem>>, %arg5: memref<8x512xf32, #tpu.memory_space<vmem>>, %arg6: memref<1x16xf32, #tpu.memory_space<vmem>>) attributes {dimension_semantics = [#tpu.dimension_semantics<parallel>], iteration_bounds = array<i64: 1>, scalar_prefetch = 0 : i64, scratch_operands = 0 : i64, tpu.core_type = #tpu.core_type<tc>, window_params = [{transform_indices = @transform_0, window_bounds = array<i64: 16, 1024>}, {transform_indices = @transform_1, window_bounds = array<i64: 16, 2>}, {pipeline_mode = #tpu.pipeline_mode<synchronous>, transform_indices = @transform_2, window_bounds = array<i64: 1024, 512>}, {pipeline_mode = #tpu.pipeline_mode<synchronous>, transform_indices = @transform_3, window_bounds = array<i64: 512, 384>}, {pipeline_mode = #tpu.pipeline_mode<synchronous>, transform_indices = @transform_4, window_bounds = array<i64: 8, 512>}, {transform_indices = @transform_5, window_bounds = array<i64: 1, 16>}]} {
    %c0 = arith.constant 0 : index
    %c0_0 = arith.constant 0 : index
    %0 = vector.load %arg5[%c0, %c0_0] : memref<8x512xf32, #tpu.memory_space<vmem>>, vector<1x512xf32>
    %c1 = arith.constant 1 : index
    %c0_1 = arith.constant 0 : index
    %1 = vector.load %arg5[%c1, %c0_1] : memref<8x512xf32, #tpu.memory_space<vmem>>, vector<1x384xf32>
    %c4 = arith.constant 4 : index
    %c0_2 = arith.constant 0 : index
    %2 = vector.load %arg5[%c4, %c0_2] : memref<8x512xf32, #tpu.memory_space<vmem>>, vector<1x384xf32>
    %c5 = arith.constant 5 : index
    %c0_3 = arith.constant 0 : index
    %3 = vector.load %arg5[%c5, %c0_3] : memref<8x512xf32, #tpu.memory_space<vmem>>, vector<1x1xf32>
    %c0_4 = arith.constant 0 : index
    %c0_5 = arith.constant 0 : index
    %4 = vector.load %arg1[%c0_4, %c0_5] : memref<16x1024xbf16, #tpu.memory_space<vmem>>, vector<16x1024xbf16>
    %c0_6 = arith.constant 0 : index
    %c0_7 = arith.constant 0 : index
    %5 = vector.load %arg3[%c0_6, %c0_7] : memref<1024x512xbf16, #tpu.memory_space<vmem>>, vector<1024x512xbf16>
    %cst = arith.constant dense<0.000000e+00> : vector<16x512xf32>
    %6 = tpu.matmul %4, %5, %cst {dimension_numbers = #tpu.dot_dimension_numbers<[1], [0], [0], [1], [0, 0, 1, 1], [], []>} : vector<16x1024xbf16>, vector<1024x512xbf16>, vector<16x512xf32> -> vector<16x512xf32>
    %7 = vector.broadcast %0 : vector<1x512xf32> to vector<16x512xf32>
    %8 = arith.addf %6, %7 : vector<16x512xf32>
    %cst_8 = arith.constant 0.000000e+00 : f32
    %9 = vector.broadcast %cst_8 : f32 to vector<16x512xf32>
    %10 = arith.maximumf %8, %9 : vector<16x512xf32>
    %11 = arith.truncf %10 : vector<16x512xf32> to vector<16x512xbf16>
    %c0_9 = arith.constant 0 : index
    %c0_10 = arith.constant 0 : index
    %12 = vector.load %arg4[%c0_9, %c0_10] : memref<512x384xbf16, #tpu.memory_space<vmem>>, vector<512x384xbf16>
    %cst_11 = arith.constant dense<0.000000e+00> : vector<16x384xf32>
    %13 = tpu.matmul %11, %12, %cst_11 {dimension_numbers = #tpu.dot_dimension_numbers<[1], [0], [0], [1], [0, 0, 1, 1], [], []>} : vector<16x512xbf16>, vector<512x384xbf16>, vector<16x384xf32> -> vector<16x384xf32>
    %c0_12 = arith.constant 0 : index
    %c0_13 = arith.constant 0 : index
    %14 = vector.load %arg2[%c0_12, %c0_13] : memref<16x2xf32, #tpu.memory_space<vmem>>, vector<16x2xf32>
    %15 = vector.extract_strided_slice %14 {offsets = [0, 0], sizes = [16, 1], strides = [1, 1]} : vector<16x2xf32> to vector<16x1xf32>
    %c2 = arith.constant 2 : index
    %c0_14 = arith.constant 0 : index
    %16 = vector.load %arg5[%c2, %c0_14] : memref<8x512xf32, #tpu.memory_space<vmem>>, vector<1x384xf32>
    %17 = vector.broadcast %15 : vector<16x1xf32> to vector<16x384xf32>
    %18 = vector.broadcast %16 : vector<1x384xf32> to vector<16x384xf32>
    %19 = arith.mulf %17, %18 : vector<16x384xf32>
    %20 = arith.addf %13, %19 : vector<16x384xf32>
    %21 = vector.extract_strided_slice %14 {offsets = [0, 1], sizes = [16, 1], strides = [1, 1]} : vector<16x2xf32> to vector<16x1xf32>
    %c3 = arith.constant 3 : index
    %c0_15 = arith.constant 0 : index
    %22 = vector.load %arg5[%c3, %c0_15] : memref<8x512xf32, #tpu.memory_space<vmem>>, vector<1x384xf32>
    %23 = vector.broadcast %21 : vector<16x1xf32> to vector<16x384xf32>
    %24 = vector.broadcast %22 : vector<1x384xf32> to vector<16x384xf32>
    %25 = arith.mulf %23, %24 : vector<16x384xf32>
    %26 = arith.addf %20, %25 : vector<16x384xf32>
    %27 = vector.broadcast %1 : vector<1x384xf32> to vector<16x384xf32>
    %28 = arith.addf %26, %27 : vector<16x384xf32>
    %cst_16 = arith.constant 0.000000e+00 : f32
    %29 = vector.broadcast %cst_16 : f32 to vector<16x384xf32>
    %30 = arith.maximumf %28, %29 : vector<16x384xf32>
    %31 = vector.broadcast %2 : vector<1x384xf32> to vector<16x384xf32>
    %32 = arith.mulf %30, %31 : vector<16x384xf32>
    %cst_17 = arith.constant dense<0.000000e+00> : vector<16xf32>
    %33 = vector.multi_reduction <add>, %32, %cst_17 [1] : vector<16x384xf32> to vector<16xf32>
    %34 = vector.shape_cast %33 : vector<16xf32> to vector<1x16xf32>
    %35 = vector.broadcast %3 : vector<1x1xf32> to vector<1x16xf32>
    %36 = arith.addf %34, %35 : vector<1x16xf32>
    %c0_18 = arith.constant 0 : index
    %c0_19 = arith.constant 0 : index
    %37 = vector.load %arg6[%c0_18, %c0_19] : memref<1x16xf32, #tpu.memory_space<vmem>>, vector<1x16xf32>
    tpu.vector_store %arg6[%c0_18, %c0_19], %36 {strides = array<i32>} : memref<1x16xf32, #tpu.memory_space<vmem>>, vector<1x16xf32>,
    return
  }
  func.func @transform_0(%arg0: i32) -> (i32, i32) {
    %c0_i32 = arith.constant 0 : i32
    %c0_i32_0 = arith.constant 0 : i32
    return %arg0, %c0_i32 : i32, i32
  }
  func.func @transform_1(%arg0: i32) -> (i32, i32) {
    %c0_i32 = arith.constant 0 : i32
    %c0_i32_0 = arith.constant 0 : i32
    return %arg0, %c0_i32 : i32, i32
  }
  func.func @transform_2(%arg0: i32) -> (i32, i32) {
    %c0_i32 = arith.constant 0 : i32
    %c0_i32_0 = arith.constant 0 : i32
    %c0_i32_1 = arith.constant 0 : i32
    return %c0_i32, %c0_i32_0 : i32, i32
  }
  func.func @transform_3(%arg0: i32) -> (i32, i32) {
    %c0_i32 = arith.constant 0 : i32
    %c0_i32_0 = arith.constant 0 : i32
    %c0_i32_1 = arith.constant 0 : i32
    return %c0_i32, %c0_i32_0 : i32, i32
  }
  func.func @transform_4(%arg0: i32) -> (i32, i32) {
    %c0_i32 = arith.constant 0 : i32
    %c0_i32_0 = arith.constant 0 : i32
    %c0_i32_1 = arith.constant 0 : i32
    return %c0_i32, %c0_i32_0 : i32, i32
  }
  func.func @transform_5(%arg0: i32) -> (i32, i32) {
    %c0_i32 = arith.constant 0 : i32
    %c0_i32_0 = arith.constant 0 : i32
    return %c0_i32, %arg0 : i32, i32
  }
}

</mosaic_0001>

<llo_original>
// kernel: tpu_custom_call.1
$region0: #{tpu_custom_call.1}
  #allocation0 [shape = 'u32[]', space=smem, size = 0x4, offset = 0x4, fixed_abs, tag = 'smem constant byte address 0x4 - core index']
  #allocation1 [shape = 'u32[144,128]{1,0:T(1,128)}', space=vmem, size = 0x12000, scoped, tag = 'internal scratch']
  %s0 = inlined_call_operand.hbm [shape: bf16[16,1024], index: 0, kind: input, shape index: {}]
  %s1 = inlined_call_operand.vmem [shape: f32[16,2], index: 1, kind: input, shape index: {}]
  %s2 = inlined_call_operand.hbm [shape: bf16[1024,512], index: 2, kind: input, shape index: {}]
  %s3 = inlined_call_operand.hbm [shape: bf16[512,384], index: 3, kind: input, shape index: {}]
  %s4 = inlined_call_operand.vmem [shape: f32[8,512], index: 4, kind: input, shape index: {}]
  %s5 = inlined_call_operand.hbm [shape: f32[1,16], index: 5, kind: output, shape index: {}]
  %s6 = sld [smem:[#allocation0]]
  $region42: #{tpu_custom_call.1} parent=0
    _
  %s8 = ssub.s32 1, %s6
  %s9 = scalar_select 0, %s8, %s6
  $region1: #{tpu_custom_call.1} parent=0
    #allocation2 [shape = 'u8[32768]{0}', space=vmem, size = 0x8000, scoped, tag = 'input window, operand 0, single buffered']
    #allocation3 [shape = 's32[1]{0}', space=sflag, size = 0x4, scoped, tag = 'scoped memory for tpu_custom_call.1']
    #allocation4 [shape = 's32[1]{0}', space=sflag, size = 0x4, scoped, tag = 'scoped memory for tpu_custom_call.1']
    #allocation5 [shape = 'u8[1048576]{0}', space=vmem, size = 0x100000, scoped, tag = 'input window, operand 2, single buffered']
    #allocation6 [shape = 's32[1]{0}', space=sflag, size = 0x4, scoped, tag = 'scoped memory for tpu_custom_call.1']
    #allocation7 [shape = 'u8[393216]{0}', space=vmem, size = 0x60000, scoped, tag = 'input window, operand 3, single buffered']
    #allocation8 [shape = 'u8[512]{0}', space=vmem, size = 0x400, scoped, tag = 'output window, operand 0, single buffered']
    %10 = vsyncpa [#allocation3], 0
    %11 = vsyncpa [#allocation6], 0
    %12 = vsyncpa [#allocation4], 0
    // Predicated region
    $region2: #{tpu_custom_call.1} parent=1 // pred_check
      _
    $region3: #{tpu_custom_call.1} parent=1 // pred_check_branch
      %14 = sbr.rel (0) target = $region5
    $region4: #{tpu_custom_call.1} parent=1 // pred_region
      %s16 = ssub.s32 1024, 1024
      %17 = vsyncadd [#allocation3], %s16
      %s18 = sshll.u32 [#allocation2], 4
      %s19 = int_to_ptr.vmem [resolvable:$true] %s18
      %24 = dma.hbm_to_vmem [thread:$0]  %s0, 1024, %s19, [#allocation3], 512, 512, 32
    $region5: #{tpu_custom_call.1} parent=1 // pred_fallthru
      _
    // Predicated region
    $region6: #{tpu_custom_call.1} parent=1 // pred_check
      _
    $region7: #{tpu_custom_call.1} parent=1 // pred_check_branch
      %26 = sbr.rel (0) target = $region9
    $region8: #{tpu_custom_call.1} parent=1 // pred_region
      _
    $region9: #{tpu_custom_call.1} parent=1 // pred_fallthru
      _
    // Predicated region
    $region10: #{tpu_custom_call.1} parent=1 // pred_check
      _
    $region11: #{tpu_custom_call.1} parent=1 // pred_check_branch
      %28 = sbr.rel (0) target = $region13
    $region12: #{tpu_custom_call.1} parent=1 // pred_region
      %s30 = ssub.s32 32768, 32768
      %31 = vsyncadd [#allocation6], %s30
      %s32 = sshll.u32 [#allocation5], 4
      %s33 = int_to_ptr.vmem [resolvable:$true] %s32
      %38 = dma.hbm_to_vmem [thread:$0]  %s2, 32768, %s33, [#allocation6], 256, 256, 16
    $region13: #{tpu_custom_call.1} parent=1 // pred_fallthru
      _
    // Predicated region
    $region14: #{tpu_custom_call.1} parent=1 // pred_check
      _
    $region15: #{tpu_custom_call.1} parent=1 // pred_check_branch
      %40 = sbr.rel (0) target = $region17
    $region16: #{tpu_custom_call.1} parent=1 // pred_region
      %s42 = ssub.s32 12288, 12288
      %43 = vsyncadd [#allocation6], %s42
      %s44 = sshll.u32 [#allocation7], 4
      %s45 = int_to_ptr.vmem [resolvable:$true] %s44
      %50 = dma.hbm_to_vmem [thread:$0]  %s3, 12288, %s45, [#allocation6], 192, 192, 12
    $region17: #{tpu_custom_call.1} parent=1 // pred_fallthru
      _
    // Predicated region
    $region18: #{tpu_custom_call.1} parent=1 // pred_check
      _
    $region19: #{tpu_custom_call.1} parent=1 // pred_check_branch
      %52 = sbr.rel (0) target = $region21
    $region20: #{tpu_custom_call.1} parent=1 // pred_region
      _
    $region21: #{tpu_custom_call.1} parent=1 // pred_fallthru
      _
    // Predicated region
    $region22: #{tpu_custom_call.1} parent=1 // pred_check
      _
    $region23: #{tpu_custom_call.1} parent=1 // pred_check_branch
      %54 = sbr.rel (0) target = $region25
    $region24: #{tpu_custom_call.1} parent=1 // pred_region
      %55 = dma.done [#allocation3], 1024
    $region25: #{tpu_custom_call.1} parent=1 // pred_fallthru
      _
    // Predicated region
    $region26: #{tpu_custom_call.1} parent=1 // pred_check
      _
    $region27: #{tpu_custom_call.1} parent=1 // pred_check_branch
      %57 = sbr.rel (0) target = $region29
    $region28: #{tpu_custom_call.1} parent=1 // pred_region
      %58 = dma.done [#allocation6], 32768
    $region29: #{tpu_custom_call.1} parent=1 // pred_fallthru
      _
    // Predicated region
    $region30: #{tpu_custom_call.1} parent=1 // pred_check
      _
    $region31: #{tpu_custom_call.1} parent=1 // pred_check_branch
      %60 = sbr.rel (0) target = $region33
    $region32: #{tpu_custom_call.1} parent=1 // pred_region
      %61 = dma.done [#allocation6], 12288
    $region33: #{tpu_custom_call.1} parent=1 // pred_fallthru
      _
    %v63 = vld [vmem:[%s4] ss:$8 sm:$0xf]
    %s64 = scalar_lea.vmem %s4, 1
    %v65 = vld [vmem:[%s64] ss:$8 sm:$0x7]
    %s66 = scalar_lea.vmem %s4, 4
    %v67 = vld [vmem:[%s66] ss:$8 sm:$0x7]
    %v68 = vld [vmem:[%s4 + $0x5] ss:$0 sm:$0xff]
    %v69 = vld [vmem:[#allocation2] sm:$0xff]
    %v70 = vld [vmem:[#allocation2 + $0x8] sm:$0xff]
    %v71 = vld [vmem:[#allocation2 + $0x10] sm:$0xff]
    %v72 = vld [vmem:[#allocation2 + $0x18] sm:$0xff]
    %v73 = vld [vmem:[#allocation2 + $0x20] sm:$0xff]
    %v74 = vld [vmem:[#allocation2 + $0x28] sm:$0xff]
    %v75 = vld [vmem:[#allocation2 + $0x30] sm:$0xff]
    %v76 = vld [vmem:[#allocation2 + $0x38] sm:$0xff]
    %v77 = vld [vmem:[#allocation5] sm:$0xff]
    %v78 = vld [vmem:[#allocation5 + $0x8] sm:$0xff]
    %v79 = vld [vmem:[#allocation5 + $0x10] sm:$0xff]
    %v80 = vld [vmem:[#allocation5 + $0x18] sm:$0xff]
    %v81 = vld [vmem:[#allocation5 + $0x20] sm:$0xff]
    %v82 = vld [vmem:[#allocation5 + $0x28] sm:$0xff]
    %v83 = vld [vmem:[#allocation5 + $0x30] sm:$0xff]
    %v84 = vld [vmem:[#allocation5 + $0x38] sm:$0xff]
    %v85 = vld [vmem:[#allocation5 + $0x40] sm:$0xff]
    %v86 = vld [vmem:[#allocation5 + $0x48] sm:$0xff]
    %v87 = vld [vmem:[#allocation5 + $0x50] sm:$0xff]
    %v88 = vld [vmem:[#allocation5 + $0x58] sm:$0xff]
    %v89 = vld [vmem:[#allocation5 + $0x60] sm:$0xff]
    %v90 = vld [vmem:[#allocation5 + $0x68] sm:$0xff]
    %v91 = vld [vmem:[#allocation5 + $0x70] sm:$0xff]
    %v92 = vld [vmem:[#allocation5 + $0x78] sm:$0xff]
    %v93 = vld [vmem:[#allocation5 + $0x80] sm:$0xff]
    %v94 = vld [vmem:[#allocation5 + $0x88] sm:$0xff]
    %v95 = vld [vmem:[#allocation5 + $0x90] sm:$0xff]
    %v96 = vld [vmem:[#allocation5 + $0x98] sm:$0xff]
    %v97 = vld [vmem:[#allocation5 + $0xa0] sm:$0xff]
    %v98 = vld [vmem:[#allocation5 + $0xa8] sm:$0xff]
    %v99 = vld [vmem:[#allocation5 + $0xb0] sm:$0xff]
    %v100 = vld [vmem:[#allocation5 + $0xb8] sm:$0xff]
    %v101 = vld [vmem:[#allocation5 + $0xc0] sm:$0xff]
    %v102 = vld [vmem:[#allocation5 + $0xc8] sm:$0xff]
    %v103 = vld [vmem:[#allocation5 + $0xd0] sm:$0xff]
    %v104 = vld [vmem:[#allocation5 + $0xd8] sm:$0xff]
    %v105 = vld [vmem:[#allocation5 + $0xe0] sm:$0xff]
    %v106 = vld [vmem:[#allocation5 + $0xe8] sm:$0xff]
    %v107 = vld [vmem:[#allocation5 + $0xf0] sm:$0xff]
    %v108 = vld [vmem:[#allocation5 + $0xf8] sm:$0xff]
    %v109 = vld [vmem:[#allocation5 + $0x100] sm:$0xff]
    %v110 = vld [vmem:[#allocation5 + $0x108] sm:$0xff]
    %v111 = vld [vmem:[#allocation5 + $0x110] sm:$0xff]
    %v112 = vld [vmem:[#allocation5 + $0x118] sm:$0xff]
    %v113 = vld [vmem:[#allocation5 + $0x120] sm:$0xff]
    %v114 = vld [vmem:[#allocation5 + $0x128] sm:$0xff]
    %v115 = vld [vmem:[#allocation5 + $0x130] sm:$0xff]
    %v116 = vld [vmem:[#allocation5 + $0x138] sm:$0xff]
    %v117 = vld [vmem:[#allocation5 + $0x140] sm:$0xff]
    %v118 = vld [vmem:[#allocation5 + $0x148] sm:$0xff]
    %v119 = vld [vmem:[#allocation5 + $0x150] sm:$0xff]
    %v120 = vld [vmem:[#allocation5 + $0x158] sm:$0xff]
    %v121 = vld [vmem:[#allocation5 + $0x160] sm:$0xff]
    %v122 = vld [vmem:[#allocation5 + $0x168] sm:$0xff]
    %v123 = vld [vmem:[#allocation5 + $0x170] sm:$0xff]
    %v124 = vld [vmem:[#allocation5 + $0x178] sm:$0xff]
    %v125 = vld [vmem:[#allocation5 + $0x180] sm:$0xff]
    %v126 = vld [vmem:[#allocation5 + $0x188] sm:$0xff]
    %v127 = vld [vmem:[#allocation5 + $0x190] sm:$0xff]
    %v128 = vld [vmem:[#allocation5 + $0x198] sm:$0xff]
    %v129 = vld [vmem:[#allocation5 + $0x1a0] sm:$0xff]
    %v130 = vld [vmem:[#allocation5 + $0x1a8] sm:$0xff]
    %v131 = vld [vmem:[#allocation5 + $0x1b0] sm:$0xff]
    %v132 = vld [vmem:[#allocation5 + $0x1b8] sm:$0xff]
    %v133 = vld [vmem:[#allocation5 + $0x1c0] sm:$0xff]
    %v134 = vld [vmem:[#allocation5 + $0x1c8] sm:$0xff]
    %v135 = vld [vmem:[#allocation5 + $0x1d0] sm:$0xff]
    %v136 = vld [vmem:[#allocation5 + $0x1d8] sm:$0xff]
    %v137 = vld [vmem:[#allocation5 + $0x1e0] sm:$0xff]
    %v138 = vld [vmem:[#allocation5 + $0x1e8] sm:$0xff]
    %v139 = vld [vmem:[#allocation5 + $0x1f0] sm:$0xff]
    %v140 = vld [vmem:[#allocation5 + $0x1f8] sm:$0xff]
    %v141 = vld [vmem:[#allocation5 + $0x200] sm:$0xff]
    %v142 = vld [vmem:[#allocation5 + $0x208] sm:$0xff]
    %v143 = vld [vmem:[#allocation5 + $0x210] sm:$0xff]
    %v144 = vld [vmem:[#allocation5 + $0x218] sm:$0xff]
    %v145 = vld [vmem:[#allocation5 + $0x220] sm:$0xff]
    %v146 = vld [vmem:[#allocation5 + $0x228] sm:$0xff]
    %v147 = vld [vmem:[#allocation5 + $0x230] sm:$0xff]
    %v148 = vld [vmem:[#allocation5 + $0x238] sm:$0xff]
    %v149 = vld [vmem:[#allocation5 + $0x240] sm:$0xff]
    %v150 = vld [vmem:[#allocation5 + $0x248] sm:$0xff]
    %v151 = vld [vmem:[#allocation5 + $0x250] sm:$0xff]
    %v152 = vld [vmem:[#allocation5 + $0x258] sm:$0xff]
    %v153 = vld [vmem:[#allocation5 + $0x260] sm:$0xff]
    %v154 = vld [vmem:[#allocation5 + $0x268] sm:$0xff]
    %v155 = vld [vmem:[#allocation5 + $0x270] sm:$0xff]
    %v156 = vld [vmem:[#allocation5 + $0x278] sm:$0xff]
    %v157 = vld [vmem:[#allocation5 + $0x280] sm:$0xff]
    %v158 = vld [vmem:[#allocation5 + $0x288] sm:$0xff]
    %v159 = vld [vmem:[#allocation5 + $0x290] sm:$0xff]
    %v160 = vld [vmem:[#allocation5 + $0x298] sm:$0xff]
    %v161 = vld [vmem:[#allocation5 + $0x2a0] sm:$0xff]
    %v162 = vld [vmem:[#allocation5 + $0x2a8] sm:$0xff]
    %v163 = vld [vmem:[#allocation5 + $0x2b0] sm:$0xff]
    %v164 = vld [vmem:[#allocation5 + $0x2b8] sm:$0xff]
    %v165 = vld [vmem:[#allocation5 + $0x2c0] sm:$0xff]
    %v166 = vld [vmem:[#allocation5 + $0x2c8] sm:$0xff]
    %v167 = vld [vmem:[#allocation5 + $0x2d0] sm:$0xff]
    %v168 = vld [vmem:[#allocation5 + $0x2d8] sm:$0xff]
    %v169 = vld [vmem:[#allocation5 + $0x2e0] sm:$0xff]
    %v170 = vld [vmem:[#allocation5 + $0x2e8] sm:$0xff]
    %v171 = vld [vmem:[#allocation5 + $0x2f0] sm:$0xff]
    %v172 = vld [vmem:[#allocation5 + $0x2f8] sm:$0xff]
    %v173 = vld [vmem:[#allocation5 + $0x300] sm:$0xff]
    %v174 = vld [vmem:[#allocation5 + $0x308] sm:$0xff]
    %v175 = vld [vmem:[#allocation5 + $0x310] sm:$0xff]
    %v176 = vld [vmem:[#allocation5 + $0x318] sm:$0xff]
    %v177 = vld [vmem:[#allocation5 + $0x320] sm:$0xff]
    %v178 = vld [vmem:[#allocation5 + $0x328] sm:$0xff]
    %v179 = vld [vmem:[#allocation5 + $0x330] sm:$0xff]
    %v180 = vld [vmem:[#allocation5 + $0x338] sm:$0xff]
    %v181 = vld [vmem:[#allocation5 + $0x340] sm:$0xff]
    %v182 = vld [vmem:[#allocation5 + $0x348] sm:$0xff]
    %v183 = vld [vmem:[#allocation5 + $0x350] sm:$0xff]
    %v184 = vld [vmem:[#allocation5 + $0x358] sm:$0xff]
    %v185 = vld [vmem:[#allocation5 + $0x360] sm:$0xff]
    %v186 = vld [vmem:[#allocation5 + $0x368] sm:$0xff]
    %v187 = vld [vmem:[#allocation5 + $0x370] sm:$0xff]
    %v188 = vld [vmem:[#allocation5 + $0x378] sm:$0xff]
    %v189 = vld [vmem:[#allocation5 + $0x380] sm:$0xff]
    %v190 = vld [vmem:[#allocation5 + $0x388] sm:$0xff]
    %v191 = vld [vmem:[#allocation5 + $0x390] sm:$0xff]
    %v192 = vld [vmem:[#allocation5 + $0x398] sm:$0xff]
    %v193 = vld [vmem:[#allocation5 + $0x3a0] sm:$0xff]
    %v194 = vld [vmem:[#allocation5 + $0x3a8] sm:$0xff]
    %v195 = vld [vmem:[#allocation5 + $0x3b0] sm:$0xff]
    %v196 = vld [vmem:[#allocation5 + $0x3b8] sm:$0xff]
    %v197 = vld [vmem:[#allocation5 + $0x3c0] sm:$0xff]
    %v198 = vld [vmem:[#allocation5 + $0x3c8] sm:$0xff]
    %v199 = vld [vmem:[#allocation5 + $0x3d0] sm:$0xff]
    %v200 = vld [vmem:[#allocation5 + $0x3d8] sm:$0xff]
    %v201 = vld [vmem:[#allocation5 + $0x3e0] sm:$0xff]
    %v202 = vld [vmem:[#allocation5 + $0x3e8] sm:$0xff]
    %v203 = vld [vmem:[#allocation5 + $0x3f0] sm:$0xff]
    %v204 = vld [vmem:[#allocation5 + $0x3f8] sm:$0xff]
    %v205 = vld [vmem:[#allocation5 + $0x400] sm:$0xff]
    %v206 = vld [vmem:[#allocation5 + $0x408] sm:$0xff]
    %v207 = vld [vmem:[#allocation5 + $0x410] sm:$0xff]
    %v208 = vld [vmem:[#allocation5 + $0x418] sm:$0xff]
    %v209 = vld [vmem:[#allocation5 + $0x420] sm:$0xff]
    %v210 = vld [vmem:[#allocation5 + $0x428] sm:$0xff]
    %v211 = vld [vmem:[#allocation5 + $0x430] sm:$0xff]
    %v212 = vld [vmem:[#allocation5 + $0x438] sm:$0xff]
    %v213 = vld [vmem:[#allocation5 + $0x440] sm:$0xff]
    %v214 = vld [vmem:[#allocation5 + $0x448] sm:$0xff]
    %v215 = vld [vmem:[#allocation5 + $0x450] sm:$0xff]
    %v216 = vld [vmem:[#allocation5 + $0x458] sm:$0xff]
    %v217 = vld [vmem:[#allocation5 + $0x460] sm:$0xff]
    %v218 = vld [vmem:[#allocation5 + $0x468] sm:$0xff]
    %v219 = vld [vmem:[#allocation5 + $0x470] sm:$0xff]
    %v220 = vld [vmem:[#allocation5 + $0x478] sm:$0xff]
    %v221 = vld [vmem:[#allocation5 + $0x480] sm:$0xff]
    %v222 = vld [vmem:[#allocation5 + $0x488] sm:$0xff]
    %v223 = vld [vmem:[#allocation5 + $0x490] sm:$0xff]
    %v224 = vld [vmem:[#allocation5 + $0x498] sm:$0xff]
    %v225 = vld [vmem:[#allocation5 + $0x4a0] sm:$0xff]
    %v226 = vld [vmem:[#allocation5 + $0x4a8] sm:$0xff]
    %v227 = vld [vmem:[#allocation5 + $0x4b0] sm:$0xff]
    %v228 = vld [vmem:[#allocation5 + $0x4b8] sm:$0xff]
    %v229 = vld [vmem:[#allocation5 + $0x4c0] sm:$0xff]
    %v230 = vld [vmem:[#allocation5 + $0x4c8] sm:$0xff]
    %v231 = vld [vmem:[#allocation5 + $0x4d0] sm:$0xff]
    %v232 = vld [vmem:[#allocation5 + $0x4d8] sm:$0xff]
    %v233 = vld [vmem:[#allocation5 + $0x4e0] sm:$0xff]
    %v234 = vld [vmem:[#allocation5 + $0x4e8] sm:$0xff]
    %v235 = vld [vmem:[#allocation5 + $0x4f0] sm:$0xff]
    %v236 = vld [vmem:[#allocation5 + $0x4f8] sm:$0xff]
    %v237 = vld [vmem:[#allocation5 + $0x500] sm:$0xff]
    %v238 = vld [vmem:[#allocation5 + $0x508] sm:$0xff]
    %v239 = vld [vmem:[#allocation5 + $0x510] sm:$0xff]
    %v240 = vld [vmem:[#allocation5 + $0x518] sm:$0xff]
    %v241 = vld [vmem:[#allocation5 + $0x520] sm:$0xff]
    %v242 = vld [vmem:[#allocation5 + $0x528] sm:$0xff]
    %v243 = vld [vmem:[#allocation5 + $0x530] sm:$0xff]
    %v244 = vld [vmem:[#allocation5 + $0x538] sm:$0xff]
    %v245 = vld [vmem:[#allocation5 + $0x540] sm:$0xff]
    %v246 = vld [vmem:[#allocation5 + $0x548] sm:$0xff]
    %v247 = vld [vmem:[#allocation5 + $0x550] sm:$0xff]
    %v248 = vld [vmem:[#allocation5 + $0x558] sm:$0xff]
    %v249 = vld [vmem:[#allocation5 + $0x560] sm:$0xff]
    %v250 = vld [vmem:[#allocation5 + $0x568] sm:$0xff]
    %v251 = vld [vmem:[#allocation5 + $0x570] sm:$0xff]
    %v252 = vld [vmem:[#allocation5 + $0x578] sm:$0xff]
    %v253 = vld [vmem:[#allocation5 + $0x580] sm:$0xff]
    %v254 = vld [vmem:[#allocation5 + $0x588] sm:$0xff]
    %v255 = vld [vmem:[#allocation5 + $0x590] sm:$0xff]
    %v256 = vld [vmem:[#allocation5 + $0x598] sm:$0xff]
    %v257 = vld [vmem:[#allocation5 + $0x5a0] sm:$0xff]
    %v258 = vld [vmem:[#allocation5 + $0x5a8] sm:$0xff]
    %v259 = vld [vmem:[#allocation5 + $0x5b0] sm:$0xff]
    %v260 = vld [vmem:[#allocation5 + $0x5b8] sm:$0xff]
    %v261 = vld [vmem:[#allocation5 + $0x5c0] sm:$0xff]
    %v262 = vld [vmem:[#allocation5 + $0x5c8] sm:$0xff]
    %v263 = vld [vmem:[#allocation5 + $0x5d0] sm:$0xff]
    %v264 = vld [vmem:[#allocation5 + $0x5d8] sm:$0xff]
    %v265 = vld [vmem:[#allocation5 + $0x5e0] sm:$0xff]
    %v266 = vld [vmem:[#allocation5 + $0x5e8] sm:$0xff]
    %v267 = vld [vmem:[#allocation5 + $0x5f0] sm:$0xff]
    %v268 = vld [vmem:[#allocation5 + $0x5f8] sm:$0xff]
    %v269 = vld [vmem:[#allocation5 + $0x600] sm:$0xff]
    %v270 = vld [vmem:[#allocation5 + $0x608] sm:$0xff]
    %v271 = vld [vmem:[#allocation5 + $0x610] sm:$0xff]
    %v272 = vld [vmem:[#allocation5 + $0x618] sm:$0xff]
    %v273 = vld [vmem:[#allocation5 + $0x620] sm:$0xff]
    %v274 = vld [vmem:[#allocation5 + $0x628] sm:$0xff]
    %v275 = vld [vmem:[#allocation5 + $0x630] sm:$0xff]
    %v276 = vld [vmem:[#allocation5 + $0x638] sm:$0xff]
    %v277 = vld [vmem:[#allocation5 + $0x640] sm:$0xff]
    %v278 = vld [vmem:[#allocation5 + $0x648] sm:$0xff]
    %v279 = vld [vmem:[#allocation5 + $0x650] sm:$0xff]
    %v280 = vld [vmem:[#allocation5 + $0x658] sm:$0xff]
    %v281 = vld [vmem:[#allocation5 + $0x660] sm:$0xff]
    %v282 = vld [vmem:[#allocation5 + $0x668] sm:$0xff]
    %v283 = vld [vmem:[#allocation5 + $0x670] sm:$0xff]
    %v284 = vld [vmem:[#allocation5 + $0x678] sm:$0xff]
    %v285 = vld [vmem:[#allocation5 + $0x680] sm:$0xff]
    %v286 = vld [vmem:[#allocation5 + $0x688] sm:$0xff]
    %v287 = vld [vmem:[#allocation5 + $0x690] sm:$0xff]
    %v288 = vld [vmem:[#allocation5 + $0x698] sm:$0xff]
    %v289 = vld [vmem:[#allocation5 + $0x6a0] sm:$0xff]
    %v290 = vld [vmem:[#allocation5 + $0x6a8] sm:$0xff]
    %v291 = vld [vmem:[#allocation5 + $0x6b0] sm:$0xff]
    %v292 = vld [vmem:[#allocation5 + $0x6b8] sm:$0xff]
    %v293 = vld [vmem:[#allocation5 + $0x6c0] sm:$0xff]
    %v294 = vld [vmem:[#allocation5 + $0x6c8] sm:$0xff]
    %v295 = vld [vmem:[#allocation5 + $0x6d0] sm:$0xff]
    %v296 = vld [vmem:[#allocation5 + $0x6d8] sm:$0xff]
    %v297 = vld [vmem:[#allocation5 + $0x6e0] sm:$0xff]
    %v298 = vld [vmem:[#allocation5 + $0x6e8] sm:$0xff]
    %v299 = vld [vmem:[#allocation5 + $0x6f0] sm:$0xff]
    %v300 = vld [vmem:[#allocation5 + $0x6f8] sm:$0xff]
    %v301 = vld [vmem:[#allocation5 + $0x700] sm:$0xff]
    %v302 = vld [vmem:[#allocation5 + $0x708] sm:$0xff]
    %v303 = vld [vmem:[#allocation5 + $0x710] sm:$0xff]
    %v304 = vld [vmem:[#allocation5 + $0x718] sm:$0xff]
    %v305 = vld [vmem:[#allocation5 + $0x720] sm:$0xff]
    %v306 = vld [vmem:[#allocation5 + $0x728] sm:$0xff]
    %v307 = vld [vmem:[#allocation5 + $0x730] sm:$0xff]
    %v308 = vld [vmem:[#allocation5 + $0x738] sm:$0xff]
    %v309 = vld [vmem:[#allocation5 + $0x740] sm:$0xff]
    %v310 = vld [vmem:[#allocation5 + $0x748] sm:$0xff]
    %v311 = vld [vmem:[#allocation5 + $0x750] sm:$0xff]
    %v312 = vld [vmem:[#allocation5 + $0x758] sm:$0xff]
    %v313 = vld [vmem:[#allocation5 + $0x760] sm:$0xff]
    %v314 = vld [vmem:[#allocation5 + $0x768] sm:$0xff]
    %v315 = vld [vmem:[#allocation5 + $0x770] sm:$0xff]
    %v316 = vld [vmem:[#allocation5 + $0x778] sm:$0xff]
    %v317 = vld [vmem:[#allocation5 + $0x780] sm:$0xff]
    %v318 = vld [vmem:[#allocation5 + $0x788] sm:$0xff]
    %v319 = vld [vmem:[#allocation5 + $0x790] sm:$0xff]
    %v320 = vld [vmem:[#allocation5 + $0x798] sm:$0xff]
    %v321 = vld [vmem:[#allocation5 + $0x7a0] sm:$0xff]
    %v322 = vld [vmem:[#allocation5 + $0x7a8] sm:$0xff]
    %v323 = vld [vmem:[#allocation5 + $0x7b0] sm:$0xff]
    %v324 = vld [vmem:[#allocation5 + $0x7b8] sm:$0xff]
    %v325 = vld [vmem:[#allocation5 + $0x7c0] sm:$0xff]
    %v326 = vld [vmem:[#allocation5 + $0x7c8] sm:$0xff]
    %v327 = vld [vmem:[#allocation5 + $0x7d0] sm:$0xff]
    %v328 = vld [vmem:[#allocation5 + $0x7d8] sm:$0xff]
    %v329 = vld [vmem:[#allocation5 + $0x7e0] sm:$0xff]
    %v330 = vld [vmem:[#allocation5 + $0x7e8] sm:$0xff]
    %v331 = vld [vmem:[#allocation5 + $0x7f0] sm:$0xff]
    %v332 = vld [vmem:[#allocation5 + $0x7f8] sm:$0xff]
    %v334 = vlaneseq
    %v335 = vshrl.u32 %v334, 7
    %v336 = vsub.s32 0, %v335
    %v337 = vrot.slane %v63, %v336
    %v338 = vlaneseq
    %v339 = vshrl.u32 %v338, 7
    %v340 = vsub.s32 1, %v339
    %v341 = vrot.slane %v63, %v340
    %v342 = vlaneseq
    %v343 = vshrl.u32 %v342, 7
    %v344 = vsub.s32 2, %v343
    %v345 = vrot.slane %v63, %v344
    %v346 = vlaneseq
    %v347 = vshrl.u32 %v346, 7
    %v348 = vsub.s32 3, %v347
    %v349 = vrot.slane %v63, %v348
    %v362 = vunpack.c.l.b16 %v69
    %v363 = vunpack.c.h.b16 %v69
    %v364 = vunpack.c.l.b16 %v70
    %v365 = vunpack.c.h.b16 %v70
    %v366 = vunpack.c.l.b16 %v71
    %v367 = vunpack.c.h.b16 %v71
    %v368 = vunpack.c.l.b16 %v72
    %v369 = vunpack.c.h.b16 %v72
    %v370 = vunpack.c.l.b16 %v73
    %v371 = vunpack.c.h.b16 %v73
    %v372 = vunpack.c.l.b16 %v74
    %v373 = vunpack.c.h.b16 %v74
    %v374 = vunpack.c.l.b16 %v75
    %v375 = vunpack.c.h.b16 %v75
    %v376 = vunpack.c.l.b16 %v76
    %v377 = vunpack.c.h.b16 %v76
    %v378 = vpack.c.b16 %v370, %v362
    %v379 = vpack.c.b16 %v371, %v363
    %v380 = vpack.c.b16 %v372, %v364
    %v381 = vpack.c.b16 %v373, %v365
    %v382 = vpack.c.b16 %v374, %v366
    %v383 = vpack.c.b16 %v375, %v367
    %v384 = vpack.c.b16 %v376, %v368
    %v385 = vpack.c.b16 %v377, %v369
    %v650 = vunpack.c.l.b16 %v77
    %v651 = vunpack.c.h.b16 %v77
    %v652 = vunpack.c.l.b16 %v78
    %v653 = vunpack.c.h.b16 %v78
    %v654 = vunpack.c.l.b16 %v79
    %v655 = vunpack.c.h.b16 %v79
    %v656 = vunpack.c.l.b16 %v80
    %v657 = vunpack.c.h.b16 %v80
    %v658 = vunpack.c.l.b16 %v81
    %v659 = vunpack.c.h.b16 %v81
    %v660 = vunpack.c.l.b16 %v82
    %v661 = vunpack.c.h.b16 %v82
    %v662 = vunpack.c.l.b16 %v83
    %v663 = vunpack.c.h.b16 %v83
    %v664 = vunpack.c.l.b16 %v84
    %v665 = vunpack.c.h.b16 %v84
    %v666 = vunpack.c.l.b16 %v85
    %v667 = vunpack.c.h.b16 %v85
    %v668 = vunpack.c.l.b16 %v86
    %v669 = vunpack.c.h.b16 %v86
    %v670 = vunpack.c.l.b16 %v87
    %v671 = vunpack.c.h.b16 %v87
    %v672 = vunpack.c.l.b16 %v88
    %v673 = vunpack.c.h.b16 %v88
    %v674 = vunpack.c.l.b16 %v89
    %v675 = vunpack.c.h.b16 %v89
    %v676 = vunpack.c.l.b16 %v90
    %v677 = vunpack.c.h.b16 %v90
    %v678 = vunpack.c.l.b16 %v91
    %v679 = vunpack.c.h.b16 %v91
    %v680 = vunpack.c.l.b16 %v92
    %v681 = vunpack.c.h.b16 %v92
    %v682 = vunpack.c.l.b16 %v93
    %v683 = vunpack.c.h.b16 %v93
    %v684 = vunpack.c.l.b16 %v94
    %v685 = vunpack.c.h.b16 %v94
    %v686 = vunpack.c.l.b16 %v95
    %v687 = vunpack.c.h.b16 %v95
    %v688 = vunpack.c.l.b16 %v96
    %v689 = vunpack.c.h.b16 %v96
    %v690 = vunpack.c.l.b16 %v97
    %v691 = vunpack.c.h.b16 %v97
    %v692 = vunpack.c.l.b16 %v98
    %v693 = vunpack.c.h.b16 %v98
    %v694 = vunpack.c.l.b16 %v99
    %v695 = vunpack.c.h.b16 %v99
    %v696 = vunpack.c.l.b16 %v100
    %v697 = vunpack.c.h.b16 %v100
    %v698 = vunpack.c.l.b16 %v101
    %v699 = vunpack.c.h.b16 %v101
    %v700 = vunpack.c.l.b16 %v102
    %v701 = vunpack.c.h.b16 %v102
    %v702 = vunpack.c.l.b16 %v103
    %v703 = vunpack.c.h.b16 %v103
    %v704 = vunpack.c.l.b16 %v104
    %v705 = vunpack.c.h.b16 %v104
    %v706 = vunpack.c.l.b16 %v105
    %v707 = vunpack.c.h.b16 %v105
    %v708 = vunpack.c.l.b16 %v106
    %v709 = vunpack.c.h.b16 %v106
    %v710 = vunpack.c.l.b16 %v107
    %v711 = vunpack.c.h.b16 %v107
    %v712 = vunpack.c.l.b16 %v108
    %v713 = vunpack.c.h.b16 %v108
    %v714 = vunpack.c.l.b16 %v109
    %v715 = vunpack.c.h.b16 %v109
    %v716 = vunpack.c.l.b16 %v110
    %v717 = vunpack.c.h.b16 %v110
    %v718 = vunpack.c.l.b16 %v111
    %v719 = vunpack.c.h.b16 %v111
    %v720 = vunpack.c.l.b16 %v112
    %v721 = vunpack.c.h.b16 %v112
    %v722 = vunpack.c.l.b16 %v113
    %v723 = vunpack.c.h.b16 %v113
    %v724 = vunpack.c.l.b16 %v114
    %v725 = vunpack.c.h.b16 %v114
    %v726 = vunpack.c.l.b16 %v115
    %v727 = vunpack.c.h.b16 %v115
    %v728 = vunpack.c.l.b16 %v116
    %v729 = vunpack.c.h.b16 %v116
    %v730 = vunpack.c.l.b16 %v117
    %v731 = vunpack.c.h.b16 %v117
    %v732 = vunpack.c.l.b16 %v118
    %v733 = vunpack.c.h.b16 %v118
    %v734 = vunpack.c.l.b16 %v119
    %v735 = vunpack.c.h.b16 %v119
    %v736 = vunpack.c.l.b16 %v120
    %v737 = vunpack.c.h.b16 %v120
    %v738 = vunpack.c.l.b16 %v121
    %v739 = vunpack.c.h.b16 %v121
    %v740 = vunpack.c.l.b16 %v122
    %v741 = vunpack.c.h.b16 %v122
    %v742 = vunpack.c.l.b16 %v123
    %v743 = vunpack.c.h.b16 %v123
    %v744 = vunpack.c.l.b16 %v124
    %v745 = vunpack.c.h.b16 %v124
    %v746 = vunpack.c.l.b16 %v125
    %v747 = vunpack.c.h.b16 %v125
    %v748 = vunpack.c.l.b16 %v126
    %v749 = vunpack.c.h.b16 %v126
    %v750 = vunpack.c.l.b16 %v127
    %v751 = vunpack.c.h.b16 %v127
    %v752 = vunpack.c.l.b16 %v128
    %v753 = vunpack.c.h.b16 %v128
    %v754 = vunpack.c.l.b16 %v129
    %v755 = vunpack.c.h.b16 %v129
    %v756 = vunpack.c.l.b16 %v130
    %v757 = vunpack.c.h.b16 %v130
    %v758 = vunpack.c.l.b16 %v131
    %v759 = vunpack.c.h.b16 %v131
    %v760 = vunpack.c.l.b16 %v132
    %v761 = vunpack.c.h.b16 %v132
    %v762 = vunpack.c.l.b16 %v133
    %v763 = vunpack.c.h.b16 %v133
    %v764 = vunpack.c.l.b16 %v134
    %v765 = vunpack.c.h.b16 %v134
    %v766 = vunpack.c.l.b16 %v135
    %v767 = vunpack.c.h.b16 %v135
    %v768 = vunpack.c.l.b16 %v136
    %v769 = vunpack.c.h.b16 %v136
    %v770 = vunpack.c.l.b16 %v137
    %v771 = vunpack.c.h.b16 %v137
    %v772 = vunpack.c.l.b16 %v138
    %v773 = vunpack.c.h.b16 %v138
    %v774 = vunpack.c.l.b16 %v139
    %v775 = vunpack.c.h.b16 %v139
    %v776 = vunpack.c.l.b16 %v140
    %v777 = vunpack.c.h.b16 %v140
    %v778 = vunpack.c.l.b16 %v141
    %v779 = vunpack.c.h.b16 %v141
    %v780 = vunpack.c.l.b16 %v142
    %v781 = vunpack.c.h.b16 %v142
    %v782 = vunpack.c.l.b16 %v143
    %v783 = vunpack.c.h.b16 %v143
    %v784 = vunpack.c.l.b16 %v144
    %v785 = vunpack.c.h.b16 %v144
    %v786 = vunpack.c.l.b16 %v145
    %v787 = vunpack.c.h.b16 %v145
    %v788 = vunpack.c.l.b16 %v146
    %v789 = vunpack.c.h.b16 %v146
    %v790 = vunpack.c.l.b16 %v147
    %v791 = vunpack.c.h.b16 %v147
    %v792 = vunpack.c.l.b16 %v148
    %v793 = vunpack.c.h.b16 %v148
    %v794 = vunpack.c.l.b16 %v149
    %v795 = vunpack.c.h.b16 %v149
    %v796 = vunpack.c.l.b16 %v150
    %v797 = vunpack.c.h.b16 %v150
    %v798 = vunpack.c.l.b16 %v151
    %v799 = vunpack.c.h.b16 %v151
    %v800 = vunpack.c.l.b16 %v152
    %v801 = vunpack.c.h.b16 %v152
    %v802 = vunpack.c.l.b16 %v153
    %v803 = vunpack.c.h.b16 %v153
    %v804 = vunpack.c.l.b16 %v154
    %v805 = vunpack.c.h.b16 %v154
    %v806 = vunpack.c.l.b16 %v155
    %v807 = vunpack.c.h.b16 %v155
    %v808 = vunpack.c.l.b16 %v156
    %v809 = vunpack.c.h.b16 %v156
    %v810 = vunpack.c.l.b16 %v157
    %v811 = vunpack.c.h.b16 %v157
    %v812 = vunpack.c.l.b16 %v158
    %v813 = vunpack.c.h.b16 %v158
    %v814 = vunpack.c.l.b16 %v159
    %v815 = vunpack.c.h.b16 %v159
    %v816 = vunpack.c.l.b16 %v160
    %v817 = vunpack.c.h.b16 %v160
    %v818 = vunpack.c.l.b16 %v161
    %v819 = vunpack.c.h.b16 %v161
    %v820 = vunpack.c.l.b16 %v162
    %v821 = vunpack.c.h.b16 %v162
    %v822 = vunpack.c.l.b16 %v163
    %v823 = vunpack.c.h.b16 %v163
    %v824 = vunpack.c.l.b16 %v164
    %v825 = vunpack.c.h.b16 %v164
    %v826 = vunpack.c.l.b16 %v165
    %v827 = vunpack.c.h.b16 %v165
    %v828 = vunpack.c.l.b16 %v166
    %v829 = vunpack.c.h.b16 %v166
    %v830 = vunpack.c.l.b16 %v167
    %v831 = vunpack.c.h.b16 %v167
    %v832 = vunpack.c.l.b16 %v168
    %v833 = vunpack.c.h.b16 %v168
    %v834 = vunpack.c.l.b16 %v169
    %v835 = vunpack.c.h.b16 %v169
    %v836 = vunpack.c.l.b16 %v170
    %v837 = vunpack.c.h.b16 %v170
    %v838 = vunpack.c.l.b16 %v171
    %v839 = vunpack.c.h.b16 %v171
    %v840 = vunpack.c.l.b16 %v172
    %v841 = vunpack.c.h.b16 %v172
    %v842 = vunpack.c.l.b16 %v173
    %v843 = vunpack.c.h.b16 %v173
    %v844 = vunpack.c.l.b16 %v174
    %v845 = vunpack.c.h.b16 %v174
    %v846 = vunpack.c.l.b16 %v175
    %v847 = vunpack.c.h.b16 %v175
    %v848 = vunpack.c.l.b16 %v176
    %v849 = vunpack.c.h.b16 %v176
    %v850 = vunpack.c.l.b16 %v177
    %v851 = vunpack.c.h.b16 %v177
    %v852 = vunpack.c.l.b16 %v178
    %v853 = vunpack.c.h.b16 %v178
    %v854 = vunpack.c.l.b16 %v179
    %v855 = vunpack.c.h.b16 %v179
    %v856 = vunpack.c.l.b16 %v180
    %v857 = vunpack.c.h.b16 %v180
    %v858 = vunpack.c.l.b16 %v181
    %v859 = vunpack.c.h.b16 %v181
    %v860 = vunpack.c.l.b16 %v182
    %v861 = vunpack.c.h.b16 %v182
    %v862 = vunpack.c.l.b16 %v183
    %v863 = vunpack.c.h.b16 %v183
    %v864 = vunpack.c.l.b16 %v184
    %v865 = vunpack.c.h.b16 %v184
    %v866 = vunpack.c.l.b16 %v185
    %v867 = vunpack.c.h.b16 %v185
    %v868 = vunpack.c.l.b16 %v186
    %v869 = vunpack.c.h.b16 %v186
    %v870 = vunpack.c.l.b16 %v187
    %v871 = vunpack.c.h.b16 %v187
    %v872 = vunpack.c.l.b16 %v188
    %v873 = vunpack.c.h.b16 %v188
    %v874 = vunpack.c.l.b16 %v189
    %v875 = vunpack.c.h.b16 %v189
    %v876 = vunpack.c.l.b16 %v190
    %v877 = vunpack.c.h.b16 %v190
    %v878 = vunpack.c.l.b16 %v191
    %v879 = vunpack.c.h.b16 %v191
    %v880 = vunpack.c.l.b16 %v192
    %v881 = vunpack.c.h.b16 %v192
    %v882 = vunpack.c.l.b16 %v193
    %v883 = vunpack.c.h.b16 %v193
    %v884 = vunpack.c.l.b16 %v194
    %v885 = vunpack.c.h.b16 %v194
    %v886 = vunpack.c.l.b16 %v195
    %v887 = vunpack.c.h.b16 %v195
    %v888 = vunpack.c.l.b16 %v196
    %v889 = vunpack.c.h.b16 %v196
    %v890 = vunpack.c.l.b16 %v197
    %v891 = vunpack.c.h.b16 %v197
    %v892 = vunpack.c.l.b16 %v198
    %v893 = vunpack.c.h.b16 %v198
    %v894 = vunpack.c.l.b16 %v199
    %v895 = vunpack.c.h.b16 %v199
    %v896 = vunpack.c.l.b16 %v200
    %v897 = vunpack.c.h.b16 %v200
    %v898 = vunpack.c.l.b16 %v201
    %v899 = vunpack.c.h.b16 %v201
    %v900 = vunpack.c.l.b16 %v202
    %v901 = vunpack.c.h.b16 %v202
    %v902 = vunpack.c.l.b16 %v203
    %v903 = vunpack.c.h.b16 %v203
    %v904 = vunpack.c.l.b16 %v204
    %v905 = vunpack.c.h.b16 %v204
    %v906 = vunpack.c.l.b16 %v205
    %v907 = vunpack.c.h.b16 %v205
    %v908 = vunpack.c.l.b16 %v206
    %v909 = vunpack.c.h.b16 %v206
    %v910 = vunpack.c.l.b16 %v207
    %v911 = vunpack.c.h.b16 %v207
    %v912 = vunpack.c.l.b16 %v208
    %v913 = vunpack.c.h.b16 %v208
    %v914 = vunpack.c.l.b16 %v209
    %v915 = vunpack.c.h.b16 %v209
    %v916 = vunpack.c.l.b16 %v210
    %v917 = vunpack.c.h.b16 %v210
    %v918 = vunpack.c.l.b16 %v211
    %v919 = vunpack.c.h.b16 %v211
    %v920 = vunpack.c.l.b16 %v212
    %v921 = vunpack.c.h.b16 %v212
    %v922 = vunpack.c.l.b16 %v213
    %v923 = vunpack.c.h.b16 %v213
    %v924 = vunpack.c.l.b16 %v214
    %v925 = vunpack.c.h.b16 %v214
    %v926 = vunpack.c.l.b16 %v215
    %v927 = vunpack.c.h.b16 %v215
    %v928 = vunpack.c.l.b16 %v216
    %v929 = vunpack.c.h.b16 %v216
    %v930 = vunpack.c.l.b16 %v217
    %v931 = vunpack.c.h.b16 %v217
    %v932 = vunpack.c.l.b16 %v218
    %v933 = vunpack.c.h.b16 %v218
    %v934 = vunpack.c.l.b16 %v219
    %v935 = vunpack.c.h.b16 %v219
    %v936 = vunpack.c.l.b16 %v220
    %v937 = vunpack.c.h.b16 %v220
    %v938 = vunpack.c.l.b16 %v221
    %v939 = vunpack.c.h.b16 %v221
    %v940 = vunpack.c.l.b16 %v222
    %v941 = vunpack.c.h.b16 %v222
    %v942 = vunpack.c.l.b16 %v223
    %v943 = vunpack.c.h.b16 %v223
    %v944 = vunpack.c.l.b16 %v224
    %v945 = vunpack.c.h.b16 %v224
    %v946 = vunpack.c.l.b16 %v225
    %v947 = vunpack.c.h.b16 %v225
    %v948 = vunpack.c.l.b16 %v226
    %v949 = vunpack.c.h.b16 %v226
    %v950 = vunpack.c.l.b16 %v227
    %v951 = vunpack.c.h.b16 %v227
    %v952 = vunpack.c.l.b16 %v228
    %v953 = vunpack.c.h.b16 %v228
    %v954 = vunpack.c.l.b16 %v229
    %v955 = vunpack.c.h.b16 %v229
    %v956 = vunpack.c.l.b16 %v230
    %v957 = vunpack.c.h.b16 %v230
    %v958 = vunpack.c.l.b16 %v231
    %v959 = vunpack.c.h.b16 %v231
    %v960 = vunpack.c.l.b16 %v232
    %v961 = vunpack.c.h.b16 %v232
    %v962 = vunpack.c.l.b16 %v233
    %v963 = vunpack.c.h.b16 %v233
    %v964 = vunpack.c.l.b16 %v234
    %v965 = vunpack.c.h.b16 %v234
    %v966 = vunpack.c.l.b16 %v235
    %v967 = vunpack.c.h.b16 %v235
    %v968 = vunpack.c.l.b16 %v236
    %v969 = vunpack.c.h.b16 %v236
    %v970 = vunpack.c.l.b16 %v237
    %v971 = vunpack.c.h.b16 %v237
    %v972 = vunpack.c.l.b16 %v238
    %v973 = vunpack.c.h.b16 %v238
    %v974 = vunpack.c.l.b16 %v239
    %v975 = vunpack.c.h.b16 %v239
    %v976 = vunpack.c.l.b16 %v240
    %v977 = vunpack.c.h.b16 %v240
    %v978 = vunpack.c.l.b16 %v241
    %v979 = vunpack.c.h.b16 %v241
    %v980 = vunpack.c.l.b16 %v242
    %v981 = vunpack.c.h.b16 %v242
    %v982 = vunpack.c.l.b16 %v243
    %v983 = vunpack.c.h.b16 %v243
    %v984 = vunpack.c.l.b16 %v244
    %v985 = vunpack.c.h.b16 %v244
    %v986 = vunpack.c.l.b16 %v245
    %v987 = vunpack.c.h.b16 %v245
    %v988 = vunpack.c.l.b16 %v246
    %v989 = vunpack.c.h.b16 %v246
    %v990 = vunpack.c.l.b16 %v247
    %v991 = vunpack.c.h.b16 %v247
    %v992 = vunpack.c.l.b16 %v248
    %v993 = vunpack.c.h.b16 %v248
    %v994 = vunpack.c.l.b16 %v249
    %v995 = vunpack.c.h.b16 %v249
    %v996 = vunpack.c.l.b16 %v250
    %v997 = vunpack.c.h.b16 %v250
    %v998 = vunpack.c.l.b16 %v251
    %v999 = vunpack.c.h.b16 %v251
    %v1000 = vunpack.c.l.b16 %v252
    %v1001 = vunpack.c.h.b16 %v252
    %v1002 = vunpack.c.l.b16 %v253
    %v1003 = vunpack.c.h.b16 %v253
    %v1004 = vunpack.c.l.b16 %v254
    %v1005 = vunpack.c.h.b16 %v254
    %v1006 = vunpack.c.l.b16 %v255
    %v1007 = vunpack.c.h.b16 %v255
    %v1008 = vunpack.c.l.b16 %v256
    %v1009 = vunpack.c.h.b16 %v256
    %v1010 = vunpack.c.l.b16 %v257
    %v1011 = vunpack.c.h.b16 %v257
    %v1012 = vunpack.c.l.b16 %v258
    %v1013 = vunpack.c.h.b16 %v258
    %v1014 = vunpack.c.l.b16 %v259
    %v1015 = vunpack.c.h.b16 %v259
    %v1016 = vunpack.c.l.b16 %v260
    %v1017 = vunpack.c.h.b16 %v260
    %v1018 = vunpack.c.l.b16 %v261
    %v1019 = vunpack.c.h.b16 %v261
    %v1020 = vunpack.c.l.b16 %v262
    %v1021 = vunpack.c.h.b16 %v262
    %v1022 = vunpack.c.l.b16 %v263
    %v1023 = vunpack.c.h.b16 %v263
    %v1024 = vunpack.c.l.b16 %v264
    %v1025 = vunpack.c.h.b16 %v264
    %v1026 = vunpack.c.l.b16 %v265
    %v1027 = vunpack.c.h.b16 %v265
    %v1028 = vunpack.c.l.b16 %v266
    %v1029 = vunpack.c.h.b16 %v266
    %v1030 = vunpack.c.l.b16 %v267
    %v1031 = vunpack.c.h.b16 %v267
    %v1032 = vunpack.c.l.b16 %v268
    %v1033 = vunpack.c.h.b16 %v268
    %v1034 = vunpack.c.l.b16 %v269
    %v1035 = vunpack.c.h.b16 %v269
    %v1036 = vunpack.c.l.b16 %v270
    %v1037 = vunpack.c.h.b16 %v270
    %v1038 = vunpack.c.l.b16 %v271
    %v1039 = vunpack.c.h.b16 %v271
    %v1040 = vunpack.c.l.b16 %v272
    %v1041 = vunpack.c.h.b16 %v272
    %v1042 = vunpack.c.l.b16 %v273
    %v1043 = vunpack.c.h.b16 %v273
    %v1044 = vunpack.c.l.b16 %v274
    %v1045 = vunpack.c.h.b16 %v274
    %v1046 = vunpack.c.l.b16 %v275
    %v1047 = vunpack.c.h.b16 %v275
    %v1048 = vunpack.c.l.b16 %v276
    %v1049 = vunpack.c.h.b16 %v276
    %v1050 = vunpack.c.l.b16 %v277
    %v1051 = vunpack.c.h.b16 %v277
    %v1052 = vunpack.c.l.b16 %v278
    %v1053 = vunpack.c.h.b16 %v278
    %v1054 = vunpack.c.l.b16 %v279
    %v1055 = vunpack.c.h.b16 %v279
    %v1056 = vunpack.c.l.b16 %v280
    %v1057 = vunpack.c.h.b16 %v280
    %v1058 = vunpack.c.l.b16 %v281
    %v1059 = vunpack.c.h.b16 %v281
    %v1060 = vunpack.c.l.b16 %v282
    %v1061 = vunpack.c.h.b16 %v282
    %v1062 = vunpack.c.l.b16 %v283
    %v1063 = vunpack.c.h.b16 %v283
    %v1064 = vunpack.c.l.b16 %v284
    %v1065 = vunpack.c.h.b16 %v284
    %v1066 = vunpack.c.l.b16 %v285
    %v1067 = vunpack.c.h.b16 %v285
    %v1068 = vunpack.c.l.b16 %v286
    %v1069 = vunpack.c.h.b16 %v286
    %v1070 = vunpack.c.l.b16 %v287
    %v1071 = vunpack.c.h.b16 %v287
    %v1072 = vunpack.c.l.b16 %v288
    %v1073 = vunpack.c.h.b16 %v288
    %v1074 = vunpack.c.l.b16 %v289
    %v1075 = vunpack.c.h.b16 %v289
    %v1076 = vunpack.c.l.b16 %v290
    %v1077 = vunpack.c.h.b16 %v290
    %v1078 = vunpack.c.l.b16 %v291
    %v1079 = vunpack.c.h.b16 %v291
    %v1080 = vunpack.c.l.b16 %v292
    %v1081 = vunpack.c.h.b16 %v292
    %v1082 = vunpack.c.l.b16 %v293
    %v1083 = vunpack.c.h.b16 %v293
    %v1084 = vunpack.c.l.b16 %v294
    %v1085 = vunpack.c.h.b16 %v294
    %v1086 = vunpack.c.l.b16 %v295
    %v1087 = vunpack.c.h.b16 %v295
    %v1088 = vunpack.c.l.b16 %v296
    %v1089 = vunpack.c.h.b16 %v296
    %v1090 = vunpack.c.l.b16 %v297
    %v1091 = vunpack.c.h.b16 %v297
    %v1092 = vunpack.c.l.b16 %v298
    %v1093 = vunpack.c.h.b16 %v298
    %v1094 = vunpack.c.l.b16 %v299
    %v1095 = vunpack.c.h.b16 %v299
    %v1096 = vunpack.c.l.b16 %v300
    %v1097 = vunpack.c.h.b16 %v300
    %v1098 = vunpack.c.l.b16 %v301
    %v1099 = vunpack.c.h.b16 %v301
    %v1100 = vunpack.c.l.b16 %v302
    %v1101 = vunpack.c.h.b16 %v302
    %v1102 = vunpack.c.l.b16 %v303
    %v1103 = vunpack.c.h.b16 %v303
    %v1104 = vunpack.c.l.b16 %v304
    %v1105 = vunpack.c.h.b16 %v304
    %v1106 = vunpack.c.l.b16 %v305
    %v1107 = vunpack.c.h.b16 %v305
    %v1108 = vunpack.c.l.b16 %v306
    %v1109 = vunpack.c.h.b16 %v306
    %v1110 = vunpack.c.l.b16 %v307
    %v1111 = vunpack.c.h.b16 %v307
    %v1112 = vunpack.c.l.b16 %v308
    %v1113 = vunpack.c.h.b16 %v308
    %v1114 = vunpack.c.l.b16 %v309
    %v1115 = vunpack.c.h.b16 %v309
    %v1116 = vunpack.c.l.b16 %v310
    %v1117 = vunpack.c.h.b16 %v310
    %v1118 = vunpack.c.l.b16 %v311
    %v1119 = vunpack.c.h.b16 %v311
    %v1120 = vunpack.c.l.b16 %v312
    %v1121 = vunpack.c.h.b16 %v312
    %v1122 = vunpack.c.l.b16 %v313
    %v1123 = vunpack.c.h.b16 %v313
    %v1124 = vunpack.c.l.b16 %v314
    %v1125 = vunpack.c.h.b16 %v314
    %v1126 = vunpack.c.l.b16 %v315
    %v1127 = vunpack.c.h.b16 %v315
    %v1128 = vunpack.c.l.b16 %v316
    %v1129 = vunpack.c.h.b16 %v316
    %v1130 = vunpack.c.l.b16 %v317
    %v1131 = vunpack.c.h.b16 %v317
    %v1132 = vunpack.c.l.b16 %v318
    %v1133 = vunpack.c.h.b16 %v318
    %v1134 = vunpack.c.l.b16 %v319
    %v1135 = vunpack.c.h.b16 %v319
    %v1136 = vunpack.c.l.b16 %v320
    %v1137 = vunpack.c.h.b16 %v320
    %v1138 = vunpack.c.l.b16 %v321
    %v1139 = vunpack.c.h.b16 %v321
    %v1140 = vunpack.c.l.b16 %v322
    %v1141 = vunpack.c.h.b16 %v322
    %v1142 = vunpack.c.l.b16 %v323
    %v1143 = vunpack.c.h.b16 %v323
    %v1144 = vunpack.c.l.b16 %v324
    %v1145 = vunpack.c.h.b16 %v324
    %v1146 = vunpack.c.l.b16 %v325
    %v1147 = vunpack.c.h.b16 %v325
    %v1148 = vunpack.c.l.b16 %v326
    %v1149 = vunpack.c.h.b16 %v326
    %v1150 = vunpack.c.l.b16 %v327
    %v1151 = vunpack.c.h.b16 %v327
    %v1152 = vunpack.c.l.b16 %v328
    %v1153 = vunpack.c.h.b16 %v328
    %v1154 = vunpack.c.l.b16 %v329
    %v1155 = vunpack.c.h.b16 %v329
    %v1156 = vunpack.c.l.b16 %v330
    %v1157 = vunpack.c.h.b16 %v330
    %v1158 = vunpack.c.l.b16 %v331
    %v1159 = vunpack.c.h.b16 %v331
    %v1160 = vunpack.c.l.b16 %v332
    %v1161 = vunpack.c.h.b16 %v332
    %v1162 = vpack.c.b16 %v654, %v650
    %v1163 = vpack.c.b16 %v655, %v651
    %v1164 = vpack.c.b16 %v656, %v652
    %v1165 = vpack.c.b16 %v657, %v653
    %v1166 = vpack.c.b16 %v662, %v658
    %v1167 = vpack.c.b16 %v663, %v659
    %v1168 = vpack.c.b16 %v664, %v660
    %v1169 = vpack.c.b16 %v665, %v661
    %v1170 = vpack.c.b16 %v670, %v666
    %v1171 = vpack.c.b16 %v671, %v667
    %v1172 = vpack.c.b16 %v672, %v668
    %v1173 = vpack.c.b16 %v673, %v669
    %v1174 = vpack.c.b16 %v678, %v674
    %v1175 = vpack.c.b16 %v679, %v675
    %v1176 = vpack.c.b16 %v680, %v676
    %v1177 = vpack.c.b16 %v681, %v677
    %v1178 = vpack.c.b16 %v686, %v682
    %v1179 = vpack.c.b16 %v687, %v683
    %v1180 = vpack.c.b16 %v688, %v684
    %v1181 = vpack.c.b16 %v689, %v685
    %v1182 = vpack.c.b16 %v694, %v690
    %v1183 = vpack.c.b16 %v695, %v691
    %v1184 = vpack.c.b16 %v696, %v692
    %v1185 = vpack.c.b16 %v697, %v693
    %v1186 = vpack.c.b16 %v702, %v698
    %v1187 = vpack.c.b16 %v703, %v699
    %v1188 = vpack.c.b16 %v704, %v700
    %v1189 = vpack.c.b16 %v705, %v701
    %v1190 = vpack.c.b16 %v710, %v706
    %v1191 = vpack.c.b16 %v711, %v707
    %v1192 = vpack.c.b16 %v712, %v708
    %v1193 = vpack.c.b16 %v713, %v709
    %v1194 = vpack.c.b16 %v718, %v714
    %v1195 = vpack.c.b16 %v719, %v715
    %v1196 = vpack.c.b16 %v720, %v716
    %v1197 = vpack.c.b16 %v721, %v717
    %v1198 = vpack.c.b16 %v726, %v722
    %v1199 = vpack.c.b16 %v727, %v723
    %v1200 = vpack.c.b16 %v728, %v724
    %v1201 = vpack.c.b16 %v729, %v725
    %v1202 = vpack.c.b16 %v734, %v730
    %v1203 = vpack.c.b16 %v735, %v731
    %v1204 = vpack.c.b16 %v736, %v732
    %v1205 = vpack.c.b16 %v737, %v733
    %v1206 = vpack.c.b16 %v742, %v738
    %v1207 = vpack.c.b16 %v743, %v739
    %v1208 = vpack.c.b16 %v744, %v740
    %v1209 = vpack.c.b16 %v745, %v741
    %v1210 = vpack.c.b16 %v750, %v746
    %v1211 = vpack.c.b16 %v751, %v747
    %v1212 = vpack.c.b16 %v752, %v748
    %v1213 = vpack.c.b16 %v753, %v749
    %v1214 = vpack.c.b16 %v758, %v754
    %v1215 = vpack.c.b16 %v759, %v755
    %v1216 = vpack.c.b16 %v760, %v756
    %v1217 = vpack.c.b16 %v761, %v757
    %v1218 = vpack.c.b16 %v766, %v762
    %v1219 = vpack.c.b16 %v767, %v763
    %v1220 = vpack.c.b16 %v768, %v764
    %v1221 = vpack.c.b16 %v769, %v765
    %v1222 = vpack.c.b16 %v774, %v770
    %v1223 = vpack.c.b16 %v775, %v771
    %v1224 = vpack.c.b16 %v776, %v772
    %v1225 = vpack.c.b16 %v777, %v773
    %v1226 = vpack.c.b16 %v782, %v778
    %v1227 = vpack.c.b16 %v783, %v779
    %v1228 = vpack.c.b16 %v784, %v780
    %v1229 = vpack.c.b16 %v785, %v781
    %v1230 = vpack.c.b16 %v790, %v786
    %v1231 = vpack.c.b16 %v791, %v787
    %v1232 = vpack.c.b16 %v792, %v788
    %v1233 = vpack.c.b16 %v793, %v789
    %v1234 = vpack.c.b16 %v798, %v794
    %v1235 = vpack.c.b16 %v799, %v795
    %v1236 = vpack.c.b16 %v800, %v796
    %v1237 = vpack.c.b16 %v801, %v797
    %v1238 = vpack.c.b16 %v806, %v802
    %v1239 = vpack.c.b16 %v807, %v803
    %v1240 = vpack.c.b16 %v808, %v804
    %v1241 = vpack.c.b16 %v809, %v805
    %v1242 = vpack.c.b16 %v814, %v810
    %v1243 = vpack.c.b16 %v815, %v811
    %v1244 = vpack.c.b16 %v816, %v812
    %v1245 = vpack.c.b16 %v817, %v813
    %v1246 = vpack.c.b16 %v822, %v818
    %v1247 = vpack.c.b16 %v823, %v819
    %v1248 = vpack.c.b16 %v824, %v820
    %v1249 = vpack.c.b16 %v825, %v821
    %v1250 = vpack.c.b16 %v830, %v826
    %v1251 = vpack.c.b16 %v831, %v827
    %v1252 = vpack.c.b16 %v832, %v828
    %v1253 = vpack.c.b16 %v833, %v829
    %v1254 = vpack.c.b16 %v838, %v834
    %v1255 = vpack.c.b16 %v839, %v835
    %v1256 = vpack.c.b16 %v840, %v836
    %v1257 = vpack.c.b16 %v841, %v837
    %v1258 = vpack.c.b16 %v846, %v842
    %v1259 = vpack.c.b16 %v847, %v843
    %v1260 = vpack.c.b16 %v848, %v844
    %v1261 = vpack.c.b16 %v849, %v845
    %v1262 = vpack.c.b16 %v854, %v850
    %v1263 = vpack.c.b16 %v855, %v851
    %v1264 = vpack.c.b16 %v856, %v852
    %v1265 = vpack.c.b16 %v857, %v853
    %v1266 = vpack.c.b16 %v862, %v858
    %v1267 = vpack.c.b16 %v863, %v859
    %v1268 = vpack.c.b16 %v864, %v860
    %v1269 = vpack.c.b16 %v865, %v861
    %v1270 = vpack.c.b16 %v870, %v866
    %v1271 = vpack.c.b16 %v871, %v867
    %v1272 = vpack.c.b16 %v872, %v868
    %v1273 = vpack.c.b16 %v873, %v869
    %v1274 = vpack.c.b16 %v878, %v874
    %v1275 = vpack.c.b16 %v879, %v875
    %v1276 = vpack.c.b16 %v880, %v876
    %v1277 = vpack.c.b16 %v881, %v877
    %v1278 = vpack.c.b16 %v886, %v882
    %v1279 = vpack.c.b16 %v887, %v883
    %v1280 = vpack.c.b16 %v888, %v884
    %v1281 = vpack.c.b16 %v889, %v885
    %v1282 = vpack.c.b16 %v894, %v890
    %v1283 = vpack.c.b16 %v895, %v891
    %v1284 = vpack.c.b16 %v896, %v892
    %v1285 = vpack.c.b16 %v897, %v893
    %v1286 = vpack.c.b16 %v902, %v898
    %v1287 = vpack.c.b16 %v903, %v899
    %v1288 = vpack.c.b16 %v904, %v900
    %v1289 = vpack.c.b16 %v905, %v901
    %v1290 = vpack.c.b16 %v910, %v906
    %v1291 = vpack.c.b16 %v911, %v907
    %v1292 = vpack.c.b16 %v912, %v908
    %v1293 = vpack.c.b16 %v913, %v909
    %v1294 = vpack.c.b16 %v918, %v914
    %v1295 = vpack.c.b16 %v919, %v915
    %v1296 = vpack.c.b16 %v920, %v916
    %v1297 = vpack.c.b16 %v921, %v917
    %v1298 = vpack.c.b16 %v926, %v922
    %v1299 = vpack.c.b16 %v927, %v923
    %v1300 = vpack.c.b16 %v928, %v924
    %v1301 = vpack.c.b16 %v929, %v925
    %v1302 = vpack.c.b16 %v934, %v930
    %v1303 = vpack.c.b16 %v935, %v931
    %v1304 = vpack.c.b16 %v936, %v932
    %v1305 = vpack.c.b16 %v937, %v933
    %v1306 = vpack.c.b16 %v942, %v938
    %v1307 = vpack.c.b16 %v943, %v939
    %v1308 = vpack.c.b16 %v944, %v940
    %v1309 = vpack.c.b16 %v945, %v941
    %v1310 = vpack.c.b16 %v950, %v946
    %v1311 = vpack.c.b16 %v951, %v947
    %v1312 = vpack.c.b16 %v952, %v948
    %v1313 = vpack.c.b16 %v953, %v949
    %v1314 = vpack.c.b16 %v958, %v954
    %v1315 = vpack.c.b16 %v959, %v955
    %v1316 = vpack.c.b16 %v960, %v956
    %v1317 = vpack.c.b16 %v961, %v957
    %v1318 = vpack.c.b16 %v966, %v962
    %v1319 = vpack.c.b16 %v967, %v963
    %v1320 = vpack.c.b16 %v968, %v964
    %v1321 = vpack.c.b16 %v969, %v965
    %v1322 = vpack.c.b16 %v974, %v970
    %v1323 = vpack.c.b16 %v975, %v971
    %v1324 = vpack.c.b16 %v976, %v972
    %v1325 = vpack.c.b16 %v977, %v973
    %v1326 = vpack.c.b16 %v982, %v978
    %v1327 = vpack.c.b16 %v983, %v979
    %v1328 = vpack.c.b16 %v984, %v980
    %v1329 = vpack.c.b16 %v985, %v981
    %v1330 = vpack.c.b16 %v990, %v986
    %v1331 = vpack.c.b16 %v991, %v987
    %v1332 = vpack.c.b16 %v992, %v988
    %v1333 = vpack.c.b16 %v993, %v989
    %v1334 = vpack.c.b16 %v998, %v994
    %v1335 = vpack.c.b16 %v999, %v995
    %v1336 = vpack.c.b16 %v1000, %v996
    %v1337 = vpack.c.b16 %v1001, %v997
    %v1338 = vpack.c.b16 %v1006, %v1002
    %v1339 = vpack.c.b16 %v1007, %v1003
    %v1340 = vpack.c.b16 %v1008, %v1004
    %v1341 = vpack.c.b16 %v1009, %v1005
    %v1342 = vpack.c.b16 %v1014, %v1010
    %v1343 = vpack.c.b16 %v1015, %v1011
    %v1344 = vpack.c.b16 %v1016, %v1012
    %v1345 = vpack.c.b16 %v1017, %v1013
    %v1346 = vpack.c.b16 %v1022, %v1018
    %v1347 = vpack.c.b16 %v1023, %v1019
    %v1348 = vpack.c.b16 %v1024, %v1020
    %v1349 = vpack.c.b16 %v1025, %v1021
    %v1350 = vpack.c.b16 %v1030, %v1026
    %v1351 = vpack.c.b16 %v1031, %v1027
    %v1352 = vpack.c.b16 %v1032, %v1028
    %v1353 = vpack.c.b16 %v1033, %v1029
    %v1354 = vpack.c.b16 %v1038, %v1034
    %v1355 = vpack.c.b16 %v1039, %v1035
    %v1356 = vpack.c.b16 %v1040, %v1036
    %v1357 = vpack.c.b16 %v1041, %v1037
    %v1358 = vpack.c.b16 %v1046, %v1042
    %v1359 = vpack.c.b16 %v1047, %v1043
    %v1360 = vpack.c.b16 %v1048, %v1044
    %v1361 = vpack.c.b16 %v1049, %v1045
    %v1362 = vpack.c.b16 %v1054, %v1050
    %v1363 = vpack.c.b16 %v1055, %v1051
    %v1364 = vpack.c.b16 %v1056, %v1052
    %v1365 = vpack.c.b16 %v1057, %v1053
    %v1366 = vpack.c.b16 %v1062, %v1058
    %v1367 = vpack.c.b16 %v1063, %v1059
    %v1368 = vpack.c.b16 %v1064, %v1060
    %v1369 = vpack.c.b16 %v1065, %v1061
    %v1370 = vpack.c.b16 %v1070, %v1066
    %v1371 = vpack.c.b16 %v1071, %v1067
    %v1372 = vpack.c.b16 %v1072, %v1068
    %v1373 = vpack.c.b16 %v1073, %v1069
    %v1374 = vpack.c.b16 %v1078, %v1074
    %v1375 = vpack.c.b16 %v1079, %v1075
    %v1376 = vpack.c.b16 %v1080, %v1076
    %v1377 = vpack.c.b16 %v1081, %v1077
    %v1378 = vpack.c.b16 %v1086, %v1082
    %v1379 = vpack.c.b16 %v1087, %v1083
    %v1380 = vpack.c.b16 %v1088, %v1084
    %v1381 = vpack.c.b16 %v1089, %v1085
    %v1382 = vpack.c.b16 %v1094, %v1090
    %v1383 = vpack.c.b16 %v1095, %v1091
    %v1384 = vpack.c.b16 %v1096, %v1092
    %v1385 = vpack.c.b16 %v1097, %v1093
    %v1386 = vpack.c.b16 %v1102, %v1098
    %v1387 = vpack.c.b16 %v1103, %v1099
    %v1388 = vpack.c.b16 %v1104, %v1100
    %v1389 = vpack.c.b16 %v1105, %v1101
    %v1390 = vpack.c.b16 %v1110, %v1106
    %v1391 = vpack.c.b16 %v1111, %v1107
    %v1392 = vpack.c.b16 %v1112, %v1108
    %v1393 = vpack.c.b16 %v1113, %v1109
    %v1394 = vpack.c.b16 %v1118, %v1114
    %v1395 = vpack.c.b16 %v1119, %v1115
    %v1396 = vpack.c.b16 %v1120, %v1116
    %v1397 = vpack.c.b16 %v1121, %v1117
    %v1398 = vpack.c.b16 %v1126, %v1122
    %v1399 = vpack.c.b16 %v1127, %v1123
    %v1400 = vpack.c.b16 %v1128, %v1124
    %v1401 = vpack.c.b16 %v1129, %v1125
    %v1402 = vpack.c.b16 %v1134, %v1130
    %v1403 = vpack.c.b16 %v1135, %v1131
    %v1404 = vpack.c.b16 %v1136, %v1132
    %v1405 = vpack.c.b16 %v1137, %v1133
    %v1406 = vpack.c.b16 %v1142, %v1138
    %v1407 = vpack.c.b16 %v1143, %v1139
    %v1408 = vpack.c.b16 %v1144, %v1140
    %v1409 = vpack.c.b16 %v1145, %v1141
    %v1410 = vpack.c.b16 %v1150, %v1146
    %v1411 = vpack.c.b16 %v1151, %v1147
    %v1412 = vpack.c.b16 %v1152, %v1148
    %v1413 = vpack.c.b16 %v1153, %v1149
    %v1414 = vpack.c.b16 %v1158, %v1154
    %v1415 = vpack.c.b16 %v1159, %v1155
    %v1416 = vpack.c.b16 %v1160, %v1156
    %v1417 = vpack.c.b16 %v1161, %v1157
    %1674 = vmatprep.subr.bf16.mxu0 %v1163
    %1675 = vmatpush1.bf16.msra.mxu0 %v1162
    %1676 = vmatprep.subr.bf16.mxu0 %v1167
    %1677 = vmatpush1.bf16.msra.mxu0 %v1166
    %1678 = vmatprep.subr.bf16.mxu0 %v1171
    %1679 = vmatpush1.bf16.msra.mxu0 %v1170
    %1680 = vmatprep.subr.bf16.mxu0 %v1175
    %1681 = vmatpush1.bf16.msra.mxu0 %v1174
    %1682 = vmatprep.subr.bf16.mxu0 %v1179
    %1683 = vmatpush1.bf16.msra.mxu0 %v1178
    %1684 = vmatprep.subr.bf16.mxu0 %v1183
    %1685 = vmatpush1.bf16.msra.mxu0 %v1182
    %1686 = vmatprep.subr.bf16.mxu0 %v1187
    %1687 = vmatpush1.bf16.msra.mxu0 %v1186
    %1688 = vmatprep.subr.bf16.mxu0 %v1191
    %1689 = vmatpush1.bf16.msra.mxu0 %v1190
    %1690 = vmatprep.subr.bf16.mxu0 %v1195
    %1691 = vmatpush1.bf16.msra.mxu0 %v1194
    %1692 = vmatprep.subr.bf16.mxu0 %v1199
    %1693 = vmatpush1.bf16.msra.mxu0 %v1198
    %1694 = vmatprep.subr.bf16.mxu0 %v1203
    %1695 = vmatpush1.bf16.msra.mxu0 %v1202
    %1696 = vmatprep.subr.bf16.mxu0 %v1207
    %1697 = vmatpush1.bf16.msra.mxu0 %v1206
    %1698 = vmatprep.subr.bf16.mxu0 %v1211
    %1699 = vmatpush1.bf16.msra.mxu0 %v1210
    %1700 = vmatprep.subr.bf16.mxu0 %v1215
    %1701 = vmatpush1.bf16.msra.mxu0 %v1214
    %1702 = vmatprep.subr.bf16.mxu0 %v1219
    %1703 = vmatpush1.bf16.msra.mxu0 %v1218
    %1704 = vmatprep.subr.bf16.mxu0 %v1223
    %1705 = vmatpush1.bf16.msra.mxu0 %v1222
    %1706 = vmatprep.mubr.bf16.mxu0 %v379
    %1707 = vmatmul.mubr.bf16.gmra.mrb[0].mxu0 %v378
    %v1708 = vpop.f32.mrb[0].mxu0
    %v1709 = vadd.f32 %v337, %v1708
    %v1710 = vpop.f32.mrb[0].mxu0
    %v1711 = vadd.f32 %v341, %v1710
    %v1712 = vpop.f32.mrb[0].mxu0
    %v1713 = vadd.f32 %v337, %v1712
    %v1714 = vpop.f32.mrb[0].mxu0
    %v1715 = vadd.f32 %v341, %v1714
    %1716 = vdwg.mxu0
    %1717 = vmatprep.subr.bf16.mxu0 %v1227
    %1718 = vmatpush1.bf16.msra.mxu0 %v1226
    %1719 = vmatprep.subr.bf16.mxu0 %v1231
    %1720 = vmatpush1.bf16.msra.mxu0 %v1230
    %1721 = vmatprep.subr.bf16.mxu0 %v1235
    %1722 = vmatpush1.bf16.msra.mxu0 %v1234
    %1723 = vmatprep.subr.bf16.mxu0 %v1239
    %1724 = vmatpush1.bf16.msra.mxu0 %v1238
    %1725 = vmatprep.subr.bf16.mxu0 %v1243
    %1726 = vmatpush1.bf16.msra.mxu0 %v1242
    %1727 = vmatprep.subr.bf16.mxu0 %v1247
    %1728 = vmatpush1.bf16.msra.mxu0 %v1246
    %1729 = vmatprep.subr.bf16.mxu0 %v1251
    %1730 = vmatpush1.bf16.msra.mxu0 %v1250
    %1731 = vmatprep.subr.bf16.mxu0 %v1255
    %1732 = vmatpush1.bf16.msra.mxu0 %v1254
    %1733 = vmatprep.subr.bf16.mxu0 %v1259
    %1734 = vmatpush1.bf16.msra.mxu0 %v1258
    %1735 = vmatprep.subr.bf16.mxu0 %v1263
    %1736 = vmatpush1.bf16.msra.mxu0 %v1262
    %1737 = vmatprep.subr.bf16.mxu0 %v1267
    %1738 = vmatpush1.bf16.msra.mxu0 %v1266
    %1739 = vmatprep.subr.bf16.mxu0 %v1271
    %1740 = vmatpush1.bf16.msra.mxu0 %v1270
    %1741 = vmatprep.subr.bf16.mxu0 %v1275
    %1742 = vmatpush1.bf16.msra.mxu0 %v1274
    %1743 = vmatprep.subr.bf16.mxu0 %v1279
    %1744 = vmatpush1.bf16.msra.mxu0 %v1278
    %1745 = vmatprep.subr.bf16.mxu0 %v1283
    %1746 = vmatpush1.bf16.msra.mxu0 %v1282
    %1747 = vmatprep.subr.bf16.mxu0 %v1287
    %1748 = vmatpush1.bf16.msra.mxu0 %v1286
    %1749 = vmatprep.mubr.bf16.mxu0 %v381
    %1750 = vmatmul.mubr.bf16.gmra.mrb[0].mxu0 %v380
    %v1751 = vpop.f32.mrb[0].mxu0
    %v1752 = vadd.f32 %v1709, %v1751
    %v1753 = vpop.f32.mrb[0].mxu0
    %v1754 = vadd.f32 %v1711, %v1753
    %v1755 = vpop.f32.mrb[0].mxu0
    %v1756 = vadd.f32 %v1713, %v1755
    %v1757 = vpop.f32.mrb[0].mxu0
    %v1758 = vadd.f32 %v1715, %v1757
    %1759 = vdwg.mxu0
    %1760 = vmatprep.subr.bf16.mxu0 %v1291
    %1761 = vmatpush1.bf16.msra.mxu0 %v1290
    %1762 = vmatprep.subr.bf16.mxu0 %v1295
    %1763 = vmatpush1.bf16.msra.mxu0 %v1294
    %1764 = vmatprep.subr.bf16.mxu0 %v1299
    %1765 = vmatpush1.bf16.msra.mxu0 %v1298
    %1766 = vmatprep.subr.bf16.mxu0 %v1303
    %1767 = vmatpush1.bf16.msra.mxu0 %v1302
    %1768 = vmatprep.subr.bf16.mxu0 %v1307
    %1769 = vmatpush1.bf16.msra.mxu0 %v1306
    %1770 = vmatprep.subr.bf16.mxu0 %v1311
    %1771 = vmatpush1.bf16.msra.mxu0 %v1310
    %1772 = vmatprep.subr.bf16.mxu0 %v1315
    %1773 = vmatpush1.bf16.msra.mxu0 %v1314
    %1774 = vmatprep.subr.bf16.mxu0 %v1319
    %1775 = vmatpush1.bf16.msra.mxu0 %v1318
    %1776 = vmatprep.subr.bf16.mxu0 %v1323
    %1777 = vmatpush1.bf16.msra.mxu0 %v1322
    %1778 = vmatprep.subr.bf16.mxu0 %v1327
    %1779 = vmatpush1.bf16.msra.mxu0 %v1326
    %1780 = vmatprep.subr.bf16.mxu0 %v1331
    %1781 = vmatpush1.bf16.msra.mxu0 %v1330
    %1782 = vmatprep.subr.bf16.mxu0 %v1335
    %1783 = vmatpush1.bf16.msra.mxu0 %v1334
    %1784 = vmatprep.subr.bf16.mxu0 %v1339
    %1785 = vmatpush1.bf16.msra.mxu0 %v1338
    %1786 = vmatprep.subr.bf16.mxu0 %v1343
    %1787 = vmatpush1.bf16.msra.mxu0 %v1342
    %1788 = vmatprep.subr.bf16.mxu0 %v1347
    %1789 = vmatpush1.bf16.msra.mxu0 %v1346
    %1790 = vmatprep.subr.bf16.mxu0 %v1351
    %1791 = vmatpush1.bf16.msra.mxu0 %v1350
    %1792 = vmatprep.mubr.bf16.mxu0 %v383
    %1793 = vmatmul.mubr.bf16.gmra.mrb[0].mxu0 %v382
    %v1794 = vpop.f32.mrb[0].mxu0
    %v1795 = vadd.f32 %v1752, %v1794
    %v1796 = vpop.f32.mrb[0].mxu0
    %v1797 = vadd.f32 %v1754, %v1796
    %v1798 = vpop.f32.mrb[0].mxu0
    %v1799 = vadd.f32 %v1756, %v1798
    %v1800 = vpop.f32.mrb[0].mxu0
    %v1801 = vadd.f32 %v1758, %v1800
    %1802 = vdwg.mxu0
    %1803 = vmatprep.subr.bf16.mxu0 %v1355
    %1804 = vmatpush1.bf16.msra.mxu0 %v1354
    %1805 = vmatprep.subr.bf16.mxu0 %v1359
    %1806 = vmatpush1.bf16.msra.mxu0 %v1358
    %1807 = vmatprep.subr.bf16.mxu0 %v1363
    %1808 = vmatpush1.bf16.msra.mxu0 %v1362
    %1809 = vmatprep.subr.bf16.mxu0 %v1367
    %1810 = vmatpush1.bf16.msra.mxu0 %v1366
    %1811 = vmatprep.subr.bf16.mxu0 %v1371
    %1812 = vmatpush1.bf16.msra.mxu0 %v1370
    %1813 = vmatprep.subr.bf16.mxu0 %v1375
    %1814 = vmatpush1.bf16.msra.mxu0 %v1374
    %1815 = vmatprep.subr.bf16.mxu0 %v1379
    %1816 = vmatpush1.bf16.msra.mxu0 %v1378
    %1817 = vmatprep.subr.bf16.mxu0 %v1383
    %1818 = vmatpush1.bf16.msra.mxu0 %v1382
    %1819 = vmatprep.subr.bf16.mxu0 %v1387
    %1820 = vmatpush1.bf16.msra.mxu0 %v1386
    %1821 = vmatprep.subr.bf16.mxu0 %v1391
    %1822 = vmatpush1.bf16.msra.mxu0 %v1390
    %1823 = vmatprep.subr.bf16.mxu0 %v1395
    %1824 = vmatpush1.bf16.msra.mxu0 %v1394
    %1825 = vmatprep.subr.bf16.mxu0 %v1399
    %1826 = vmatpush1.bf16.msra.mxu0 %v1398
    %1827 = vmatprep.subr.bf16.mxu0 %v1403
    %1828 = vmatpush1.bf16.msra.mxu0 %v1402
    %1829 = vmatprep.subr.bf16.mxu0 %v1407
    %1830 = vmatpush1.bf16.msra.mxu0 %v1406
    %1831 = vmatprep.subr.bf16.mxu0 %v1411
    %1832 = vmatpush1.bf16.msra.mxu0 %v1410
    %1833 = vmatprep.subr.bf16.mxu0 %v1415
    %1834 = vmatpush1.bf16.msra.mxu0 %v1414
    %1835 = vmatprep.mubr.bf16.mxu0 %v385
    %1836 = vmatmul.mubr.bf16.gmra.mrb[0].mxu0 %v384
    %v1837 = vpop.f32.mrb[0].mxu0
    %v1838 = vadd.f32 %v1795, %v1837
    %v1839 = vpop.f32.mrb[0].mxu0
    %v1840 = vadd.f32 %v1797, %v1839
    %v1841 = vpop.f32.mrb[0].mxu0
    %v1842 = vadd.f32 %v1799, %v1841
    %v1843 = vpop.f32.mrb[0].mxu0
    %v1844 = vadd.f32 %v1801, %v1843
    %1845 = vdwg.mxu0
    %1846 = vmatprep.subr.bf16.mxu0 %v1165
    %1847 = vmatpush1.bf16.msra.mxu0 %v1164
    %1848 = vmatprep.subr.bf16.mxu0 %v1169
    %1849 = vmatpush1.bf16.msra.mxu0 %v1168
    %1850 = vmatprep.subr.bf16.mxu0 %v1173
    %1851 = vmatpush1.bf16.msra.mxu0 %v1172
    %1852 = vmatprep.subr.bf16.mxu0 %v1177
    %1853 = vmatpush1.bf16.msra.mxu0 %v1176
    %1854 = vmatprep.subr.bf16.mxu0 %v1181
    %1855 = vmatpush1.bf16.msra.mxu0 %v1180
    %1856 = vmatprep.subr.bf16.mxu0 %v1185
    %1857 = vmatpush1.bf16.msra.mxu0 %v1184
    %1858 = vmatprep.subr.bf16.mxu0 %v1189
    %1859 = vmatpush1.bf16.msra.mxu0 %v1188
    %1860 = vmatprep.subr.bf16.mxu0 %v1193
    %1861 = vmatpush1.bf16.msra.mxu0 %v1192
    %1862 = vmatprep.subr.bf16.mxu0 %v1197
    %1863 = vmatpush1.bf16.msra.mxu0 %v1196
    %1864 = vmatprep.subr.bf16.mxu0 %v1201
    %1865 = vmatpush1.bf16.msra.mxu0 %v1200
    %1866 = vmatprep.subr.bf16.mxu0 %v1205
    %1867 = vmatpush1.bf16.msra.mxu0 %v1204
    %1868 = vmatprep.subr.bf16.mxu0 %v1209
    %1869 = vmatpush1.bf16.msra.mxu0 %v1208
    %1870 = vmatprep.subr.bf16.mxu0 %v1213
    %1871 = vmatpush1.bf16.msra.mxu0 %v1212
    %1872 = vmatprep.subr.bf16.mxu0 %v1217
    %1873 = vmatpush1.bf16.msra.mxu0 %v1216
    %1874 = vmatprep.subr.bf16.mxu0 %v1221
    %1875 = vmatpush1.bf16.msra.mxu0 %v1220
    %1876 = vmatprep.subr.bf16.mxu0 %v1225
    %1877 = vmatpush1.bf16.msra.mxu0 %v1224
    %1878 = vmatprep.mubr.bf16.mxu0 %v379
    %1879 = vmatmul.mubr.bf16.gmra.mrb[0].mxu0 %v378
    %v1880 = vpop.f32.mrb[0].mxu0
    %v1881 = vadd.f32 %v345, %v1880
    %v1882 = vpop.f32.mrb[0].mxu0
    %v1883 = vadd.f32 %v349, %v1882
    %v1884 = vpop.f32.mrb[0].mxu0
    %v1885 = vadd.f32 %v345, %v1884
    %v1886 = vpop.f32.mrb[0].mxu0
    %v1887 = vadd.f32 %v349, %v1886
    %1888 = vdwg.mxu0
    %1889 = vmatprep.subr.bf16.mxu0 %v1229
    %1890 = vmatpush1.bf16.msra.mxu0 %v1228
    %1891 = vmatprep.subr.bf16.mxu0 %v1233
    %1892 = vmatpush1.bf16.msra.mxu0 %v1232
    %1893 = vmatprep.subr.bf16.mxu0 %v1237
    %1894 = vmatpush1.bf16.msra.mxu0 %v1236
    %1895 = vmatprep.subr.bf16.mxu0 %v1241
    %1896 = vmatpush1.bf16.msra.mxu0 %v1240
    %1897 = vmatprep.subr.bf16.mxu0 %v1245
    %1898 = vmatpush1.bf16.msra.mxu0 %v1244
    %1899 = vmatprep.subr.bf16.mxu0 %v1249
    %1900 = vmatpush1.bf16.msra.mxu0 %v1248
    %1901 = vmatprep.subr.bf16.mxu0 %v1253
    %1902 = vmatpush1.bf16.msra.mxu0 %v1252
    %1903 = vmatprep.subr.bf16.mxu0 %v1257
    %1904 = vmatpush1.bf16.msra.mxu0 %v1256
    %1905 = vmatprep.subr.bf16.mxu0 %v1261
    %1906 = vmatpush1.bf16.msra.mxu0 %v1260
    %1907 = vmatprep.subr.bf16.mxu0 %v1265
    %1908 = vmatpush1.bf16.msra.mxu0 %v1264
    %1909 = vmatprep.subr.bf16.mxu0 %v1269
    %1910 = vmatpush1.bf16.msra.mxu0 %v1268
    %1911 = vmatprep.subr.bf16.mxu0 %v1273
    %1912 = vmatpush1.bf16.msra.mxu0 %v1272
    %1913 = vmatprep.subr.bf16.mxu0 %v1277
    %1914 = vmatpush1.bf16.msra.mxu0 %v1276
    %1915 = vmatprep.subr.bf16.mxu0 %v1281
    %1916 = vmatpush1.bf16.msra.mxu0 %v1280
    %1917 = vmatprep.subr.bf16.mxu0 %v1285
    %1918 = vmatpush1.bf16.msra.mxu0 %v1284
    %1919 = vmatprep.subr.bf16.mxu0 %v1289
    %1920 = vmatpush1.bf16.msra.mxu0 %v1288
    %1921 = vmatprep.mubr.bf16.mxu0 %v381
    %1922 = vmatmul.mubr.bf16.gmra.mrb[0].mxu0 %v380
    %v1923 = vpop.f32.mrb[0].mxu0
    %v1924 = vadd.f32 %v1881, %v1923
    %v1925 = vpop.f32.mrb[0].mxu0
    %v1926 = vadd.f32 %v1883, %v1925
    %v1927 = vpop.f32.mrb[0].mxu0
    %v1928 = vadd.f32 %v1885, %v1927
    %v1929 = vpop.f32.mrb[0].mxu0
    %v1930 = vadd.f32 %v1887, %v1929
    %1931 = vdwg.mxu0
    %1932 = vmatprep.subr.bf16.mxu0 %v1293
    %1933 = vmatpush1.bf16.msra.mxu0 %v1292
    %1934 = vmatprep.subr.bf16.mxu0 %v1297
    %1935 = vmatpush1.bf16.msra.mxu0 %v1296
    %1936 = vmatprep.subr.bf16.mxu0 %v1301
    %1937 = vmatpush1.bf16.msra.mxu0 %v1300
    %1938 = vmatprep.subr.bf16.mxu0 %v1305
    %1939 = vmatpush1.bf16.msra.mxu0 %v1304
    %1940 = vmatprep.subr.bf16.mxu0 %v1309
    %1941 = vmatpush1.bf16.msra.mxu0 %v1308
    %1942 = vmatprep.subr.bf16.mxu0 %v1313
    %1943 = vmatpush1.bf16.msra.mxu0 %v1312
    %1944 = vmatprep.subr.bf16.mxu0 %v1317
    %1945 = vmatpush1.bf16.msra.mxu0 %v1316
    %1946 = vmatprep.subr.bf16.mxu0 %v1321
    %1947 = vmatpush1.bf16.msra.mxu0 %v1320
    %1948 = vmatprep.subr.bf16.mxu0 %v1325
    %1949 = vmatpush1.bf16.msra.mxu0 %v1324
    %1950 = vmatprep.subr.bf16.mxu0 %v1329
    %1951 = vmatpush1.bf16.msra.mxu0 %v1328
    %1952 = vmatprep.subr.bf16.mxu0 %v1333
    %1953 = vmatpush1.bf16.msra.mxu0 %v1332
    %1954 = vmatprep.subr.bf16.mxu0 %v1337
    %1955 = vmatpush1.bf16.msra.mxu0 %v1336
    %1956 = vmatprep.subr.bf16.mxu0 %v1341
    %1957 = vmatpush1.bf16.msra.mxu0 %v1340
    %1958 = vmatprep.subr.bf16.mxu0 %v1345
    %1959 = vmatpush1.bf16.msra.mxu0 %v1344
    %1960 = vmatprep.subr.bf16.mxu0 %v1349
    %1961 = vmatpush1.bf16.msra.mxu0 %v1348
    %1962 = vmatprep.subr.bf16.mxu0 %v1353
    %1963 = vmatpush1.bf16.msra.mxu0 %v1352
    %1964 = vmatprep.mubr.bf16.mxu0 %v383
    %1965 = vmatmul.mubr.bf16.gmra.mrb[0].mxu0 %v382
    %v1966 = vpop.f32.mrb[0].mxu0
    %v1967 = vadd.f32 %v1924, %v1966
    %v1968 = vpop.f32.mrb[0].mxu0
    %v1969 = vadd.f32 %v1926, %v1968
    %v1970 = vpop.f32.mrb[0].mxu0
    %v1971 = vadd.f32 %v1928, %v1970
    %v1972 = vpop.f32.mrb[0].mxu0
    %v1973 = vadd.f32 %v1930, %v1972
    %1974 = vdwg.mxu0
    %1975 = vmatprep.subr.bf16.mxu0 %v1357
    %1976 = vmatpush1.bf16.msra.mxu0 %v1356
    %1977 = vmatprep.subr.bf16.mxu0 %v1361
    %1978 = vmatpush1.bf16.msra.mxu0 %v1360
    %1979 = vmatprep.subr.bf16.mxu0 %v1365
    %1980 = vmatpush1.bf16.msra.mxu0 %v1364
    %1981 = vmatprep.subr.bf16.mxu0 %v1369
    %1982 = vmatpush1.bf16.msra.mxu0 %v1368
    %1983 = vmatprep.subr.bf16.mxu0 %v1373
    %1984 = vmatpush1.bf16.msra.mxu0 %v1372
    %1985 = vmatprep.subr.bf16.mxu0 %v1377
    %1986 = vmatpush1.bf16.msra.mxu0 %v1376
    %1987 = vmatprep.subr.bf16.mxu0 %v1381
    %1988 = vmatpush1.bf16.msra.mxu0 %v1380
    %1989 = vmatprep.subr.bf16.mxu0 %v1385
    %1990 = vmatpush1.bf16.msra.mxu0 %v1384
    %1991 = vmatprep.subr.bf16.mxu0 %v1389
    %1992 = vmatpush1.bf16.msra.mxu0 %v1388
    %1993 = vmatprep.subr.bf16.mxu0 %v1393
    %1994 = vmatpush1.bf16.msra.mxu0 %v1392
    %1995 = vmatprep.subr.bf16.mxu0 %v1397
    %1996 = vmatpush1.bf16.msra.mxu0 %v1396
    %1997 = vmatprep.subr.bf16.mxu0 %v1401
    %1998 = vmatpush1.bf16.msra.mxu0 %v1400
    %1999 = vmatprep.subr.bf16.mxu0 %v1405
    %2000 = vmatpush1.bf16.msra.mxu0 %v1404
    %2001 = vmatprep.subr.bf16.mxu0 %v1409
    %2002 = vmatpush1.bf16.msra.mxu0 %v1408
    %2003 = vmatprep.subr.bf16.mxu0 %v1413
    %2004 = vmatpush1.bf16.msra.mxu0 %v1412
    %2005 = vmatprep.subr.bf16.mxu0 %v1417
    %2006 = vmatpush1.bf16.msra.mxu0 %v1416
    %2007 = vmatprep.mubr.bf16.mxu0 %v385
    %2008 = vmatmul.mubr.bf16.gmra.mrb[0].mxu0 %v384
    %v2009 = vpop.f32.mrb[0].mxu0
    %v2010 = vadd.f32 %v1967, %v2009
    %v2011 = vpop.f32.mrb[0].mxu0
    %v2012 = vadd.f32 %v1969, %v2011
    %v2013 = vpop.f32.mrb[0].mxu0
    %v2014 = vadd.f32 %v1971, %v2013
    %v2015 = vpop.f32.mrb[0].mxu0
    %v2016 = vadd.f32 %v1973, %v2015
    %2017 = vdwg.mxu0
    %v2018 = vmax.f32 %v1838, 0.0
    %v2019 = vmax.f32 %v1840, 0.0
    %v2020 = vmax.f32 %v2010, 0.0
    %v2021 = vmax.f32 %v2012, 0.0
    %v2022 = vmax.f32 %v1842, 0.0
    %v2023 = vmax.f32 %v1844, 0.0
    %v2024 = vmax.f32 %v2014, 0.0
    %v2025 = vmax.f32 %v2016, 0.0
    %v2026 = vpack.c.bf16 %v2022, %v2018
    %v2027 = vpack.c.bf16 %v2023, %v2019
    %v2028 = vpack.c.bf16 %v2024, %v2020
    %v2029 = vpack.c.bf16 %v2025, %v2021
    %v2030 = vld [vmem:[#allocation7] sm:$0xff]
    %v2031 = vld [vmem:[#allocation7 + $0x8] sm:$0xf]
    %v2032 = vld [vmem:[#allocation7 + $0xc] sm:$0xff]
    %v2033 = vld [vmem:[#allocation7 + $0x14] sm:$0xf]
    %v2034 = vld [vmem:[#allocation7 + $0x18] sm:$0xff]
    %v2035 = vld [vmem:[#allocation7 + $0x20] sm:$0xf]
    %v2036 = vld [vmem:[#allocation7 + $0x24] sm:$0xff]
    %v2037 = vld [vmem:[#allocation7 + $0x2c] sm:$0xf]
    %v2038 = vld [vmem:[#allocation7 + $0x30] sm:$0xff]
    %v2039 = vld [vmem:[#allocation7 + $0x38] sm:$0xf]
    %v2040 = vld [vmem:[#allocation7 + $0x3c] sm:$0xff]
    %v2041 = vld [vmem:[#allocation7 + $0x44] sm:$0xf]
    %v2042 = vld [vmem:[#allocation7 + $0x48] sm:$0xff]
    %v2043 = vld [vmem:[#allocation7 + $0x50] sm:$0xf]
    %v2044 = vld [vmem:[#allocation7 + $0x54] sm:$0xff]
    %v2045 = vld [vmem:[#allocation7 + $0x5c] sm:$0xf]
    %v2046 = vld [vmem:[#allocation7 + $0x60] sm:$0xff]
    %v2047 = vld [vmem:[#allocation7 + $0x68] sm:$0xf]
    %v2048 = vld [vmem:[#allocation7 + $0x6c] sm:$0xff]
    %v2049 = vld [vmem:[#allocation7 + $0x74] sm:$0xf]
    %v2050 = vld [vmem:[#allocation7 + $0x78] sm:$0xff]
    %v2051 = vld [vmem:[#allocation7 + $0x80] sm:$0xf]
    %v2052 = vld [vmem:[#allocation7 + $0x84] sm:$0xff]
    %v2053 = vld [vmem:[#allocation7 + $0x8c] sm:$0xf]
    %v2054 = vld [vmem:[#allocation7 + $0x90] sm:$0xff]
    %v2055 = vld [vmem:[#allocation7 + $0x98] sm:$0xf]
    %v2056 = vld [vmem:[#allocation7 + $0x9c] sm:$0xff]
    %v2057 = vld [vmem:[#allocation7 + $0xa4] sm:$0xf]
    %v2058 = vld [vmem:[#allocation7 + $0xa8] sm:$0xff]
    %v2059 = vld [vmem:[#allocation7 + $0xb0] sm:$0xf]
    %v2060 = vld [vmem:[#allocation7 + $0xb4] sm:$0xff]
    %v2061 = vld [vmem:[#allocation7 + $0xbc] sm:$0xf]
    %v2062 = vld [vmem:[#allocation7 + $0xc0] sm:$0xff]
    %v2063 = vld [vmem:[#allocation7 + $0xc8] sm:$0xf]
    %v2064 = vld [vmem:[#allocation7 + $0xcc] sm:$0xff]
    %v2065 = vld [vmem:[#allocation7 + $0xd4] sm:$0xf]
    %v2066 = vld [vmem:[#allocation7 + $0xd8] sm:$0xff]
    %v2067 = vld [vmem:[#allocation7 + $0xe0] sm:$0xf]
    %v2068 = vld [vmem:[#allocation7 + $0xe4] sm:$0xff]
    %v2069 = vld [vmem:[#allocation7 + $0xec] sm:$0xf]
    %v2070 = vld [vmem:[#allocation7 + $0xf0] sm:$0xff]
    %v2071 = vld [vmem:[#allocation7 + $0xf8] sm:$0xf]
    %v2072 = vld [vmem:[#allocation7 + $0xfc] sm:$0xff]
    %v2073 = vld [vmem:[#allocation7 + $0x104] sm:$0xf]
    %v2074 = vld [vmem:[#allocation7 + $0x108] sm:$0xff]
    %v2075 = vld [vmem:[#allocation7 + $0x110] sm:$0xf]
    %v2076 = vld [vmem:[#allocation7 + $0x114] sm:$0xff]
    %v2077 = vld [vmem:[#allocation7 + $0x11c] sm:$0xf]
    %v2078 = vld [vmem:[#allocation7 + $0x120] sm:$0xff]
    %v2079 = vld [vmem:[#allocation7 + $0x128] sm:$0xf]
    %v2080 = vld [vmem:[#allocation7 + $0x12c] sm:$0xff]
    %v2081 = vld [vmem:[#allocation7 + $0x134] sm:$0xf]
    %v2082 = vld [vmem:[#allocation7 + $0x138] sm:$0xff]
    %v2083 = vld [vmem:[#allocation7 + $0x140] sm:$0xf]
    %v2084 = vld [vmem:[#allocation7 + $0x144] sm:$0xff]
    %v2085 = vld [vmem:[#allocation7 + $0x14c] sm:$0xf]
    %v2086 = vld [vmem:[#allocation7 + $0x150] sm:$0xff]
    %v2087 = vld [vmem:[#allocation7 + $0x158] sm:$0xf]
    %v2088 = vld [vmem:[#allocation7 + $0x15c] sm:$0xff]
    %v2089 = vld [vmem:[#allocation7 + $0x164] sm:$0xf]
    %v2090 = vld [vmem:[#allocation7 + $0x168] sm:$0xff]
    %v2091 = vld [vmem:[#allocation7 + $0x170] sm:$0xf]
    %v2092 = vld [vmem:[#allocation7 + $0x174] sm:$0xff]
    %v2093 = vld [vmem:[#allocation7 + $0x17c] sm:$0xf]
    %v2094 = vld [vmem:[#allocation7 + $0x180] sm:$0xff]
    %v2095 = vld [vmem:[#allocation7 + $0x188] sm:$0xf]
    %v2096 = vld [vmem:[#allocation7 + $0x18c] sm:$0xff]
    %v2097 = vld [vmem:[#allocation7 + $0x194] sm:$0xf]
    %v2098 = vld [vmem:[#allocation7 + $0x198] sm:$0xff]
    %v2099 = vld [vmem:[#allocation7 + $0x1a0] sm:$0xf]
    %v2100 = vld [vmem:[#allocation7 + $0x1a4] sm:$0xff]
    %v2101 = vld [vmem:[#allocation7 + $0x1ac] sm:$0xf]
    %v2102 = vld [vmem:[#allocation7 + $0x1b0] sm:$0xff]
    %v2103 = vld [vmem:[#allocation7 + $0x1b8] sm:$0xf]
    %v2104 = vld [vmem:[#allocation7 + $0x1bc] sm:$0xff]
    %v2105 = vld [vmem:[#allocation7 + $0x1c4] sm:$0xf]
    %v2106 = vld [vmem:[#allocation7 + $0x1c8] sm:$0xff]
    %v2107 = vld [vmem:[#allocation7 + $0x1d0] sm:$0xf]
    %v2108 = vld [vmem:[#allocation7 + $0x1d4] sm:$0xff]
    %v2109 = vld [vmem:[#allocation7 + $0x1dc] sm:$0xf]
    %v2110 = vld [vmem:[#allocation7 + $0x1e0] sm:$0xff]
    %v2111 = vld [vmem:[#allocation7 + $0x1e8] sm:$0xf]
    %v2112 = vld [vmem:[#allocation7 + $0x1ec] sm:$0xff]
    %v2113 = vld [vmem:[#allocation7 + $0x1f4] sm:$0xf]
    %v2114 = vld [vmem:[#allocation7 + $0x1f8] sm:$0xff]
    %v2115 = vld [vmem:[#allocation7 + $0x200] sm:$0xf]
    %v2116 = vld [vmem:[#allocation7 + $0x204] sm:$0xff]
    %v2117 = vld [vmem:[#allocation7 + $0x20c] sm:$0xf]
    %v2118 = vld [vmem:[#allocation7 + $0x210] sm:$0xff]
    %v2119 = vld [vmem:[#allocation7 + $0x218] sm:$0xf]
    %v2120 = vld [vmem:[#allocation7 + $0x21c] sm:$0xff]
    %v2121 = vld [vmem:[#allocation7 + $0x224] sm:$0xf]
    %v2122 = vld [vmem:[#allocation7 + $0x228] sm:$0xff]
    %v2123 = vld [vmem:[#allocation7 + $0x230] sm:$0xf]
    %v2124 = vld [vmem:[#allocation7 + $0x234] sm:$0xff]
    %v2125 = vld [vmem:[#allocation7 + $0x23c] sm:$0xf]
    %v2126 = vld [vmem:[#allocation7 + $0x240] sm:$0xff]
    %v2127 = vld [vmem:[#allocation7 + $0x248] sm:$0xf]
    %v2128 = vld [vmem:[#allocation7 + $0x24c] sm:$0xff]
    %v2129 = vld [vmem:[#allocation7 + $0x254] sm:$0xf]
    %v2130 = vld [vmem:[#allocation7 + $0x258] sm:$0xff]
    %v2131 = vld [vmem:[#allocation7 + $0x260] sm:$0xf]
    %v2132 = vld [vmem:[#allocation7 + $0x264] sm:$0xff]
    %v2133 = vld [vmem:[#allocation7 + $0x26c] sm:$0xf]
    %v2134 = vld [vmem:[#allocation7 + $0x270] sm:$0xff]
    %v2135 = vld [vmem:[#allocation7 + $0x278] sm:$0xf]
    %v2136 = vld [vmem:[#allocation7 + $0x27c] sm:$0xff]
    %v2137 = vld [vmem:[#allocation7 + $0x284] sm:$0xf]
    %v2138 = vld [vmem:[#allocation7 + $0x288] sm:$0xff]
    %v2139 = vld [vmem:[#allocation7 + $0x290] sm:$0xf]
    %v2140 = vld [vmem:[#allocation7 + $0x294] sm:$0xff]
    %v2141 = vld [vmem:[#allocation7 + $0x29c] sm:$0xf]
    %v2142 = vld [vmem:[#allocation7 + $0x2a0] sm:$0xff]
    %v2143 = vld [vmem:[#allocation7 + $0x2a8] sm:$0xf]
    %v2144 = vld [vmem:[#allocation7 + $0x2ac] sm:$0xff]
    %v2145 = vld [vmem:[#allocation7 + $0x2b4] sm:$0xf]
    %v2146 = vld [vmem:[#allocation7 + $0x2b8] sm:$0xff]
    %v2147 = vld [vmem:[#allocation7 + $0x2c0] sm:$0xf]
    %v2148 = vld [vmem:[#allocation7 + $0x2c4] sm:$0xff]
    %v2149 = vld [vmem:[#allocation7 + $0x2cc] sm:$0xf]
    %v2150 = vld [vmem:[#allocation7 + $0x2d0] sm:$0xff]
    %v2151 = vld [vmem:[#allocation7 + $0x2d8] sm:$0xf]
    %v2152 = vld [vmem:[#allocation7 + $0x2dc] sm:$0xff]
    %v2153 = vld [vmem:[#allocation7 + $0x2e4] sm:$0xf]
    %v2154 = vld [vmem:[#allocation7 + $0x2e8] sm:$0xff]
    %v2155 = vld [vmem:[#allocation7 + $0x2f0] sm:$0xf]
    %v2156 = vld [vmem:[#allocation7 + $0x2f4] sm:$0xff]
    %v2157 = vld [vmem:[#allocation7 + $0x2fc] sm:$0xf]
    %v2158 = vld [vmem:[%s1] sm:$0xff]
    %v2159 = vld [vmem:[%s1 + $0x8] sm:$0xff]
    %s2160 = scalar_lea.vmem %s4, 2
    %v2161 = vld [vmem:[%s2160] ss:$8 sm:$0x7]
    %2163 = vset.pattern.permute.xlu0 0
    %2164 = vperm.xlu0 %2163, %v2158
    %v2165 = vpop.permute.xlu0 %2164
    %2168 = vset.pattern.permute.xlu0 0
    %2169 = vperm.xlu0 %2168, %v2159
    %v2170 = vpop.permute.xlu0 %2169
    %v2173 = vlaneseq
    %v2174 = vshrl.u32 %v2173, 7
    %v2175 = vsub.s32 0, %v2174
    %v2176 = vrot.slane %v2161, %v2175
    %v2177 = vlaneseq
    %v2178 = vshrl.u32 %v2177, 7
    %v2179 = vsub.s32 1, %v2178
    %v2180 = vrot.slane %v2161, %v2179
    %v2181 = vlaneseq
    %v2182 = vshrl.u32 %v2181, 7
    %v2183 = vsub.s32 2, %v2182
    %v2184 = vrot.slane %v2161, %v2183
    %v2188 = vmul.f32 %v2165, %v2176
    %v2189 = vmul.f32 %v2165, %v2180
    %v2190 = vmul.f32 %v2165, %v2184
    %v2191 = vmul.f32 %v2170, %v2176
    %v2192 = vmul.f32 %v2170, %v2180
    %v2193 = vmul.f32 %v2170, %v2184
    %v2322 = vunpack.c.l.b16 %v2030
    %v2323 = vunpack.c.h.b16 %v2030
    %v2324 = vunpack.c.l.b16 %v2031
    %v2325 = vunpack.c.l.b16 %v2032
    %v2326 = vunpack.c.h.b16 %v2032
    %v2327 = vunpack.c.l.b16 %v2033
    %v2328 = vunpack.c.l.b16 %v2034
    %v2329 = vunpack.c.h.b16 %v2034
    %v2330 = vunpack.c.l.b16 %v2035
    %v2331 = vunpack.c.l.b16 %v2036
    %v2332 = vunpack.c.h.b16 %v2036
    %v2333 = vunpack.c.l.b16 %v2037
    %v2334 = vunpack.c.l.b16 %v2038
    %v2335 = vunpack.c.h.b16 %v2038
    %v2336 = vunpack.c.l.b16 %v2039
    %v2337 = vunpack.c.l.b16 %v2040
    %v2338 = vunpack.c.h.b16 %v2040
    %v2339 = vunpack.c.l.b16 %v2041
    %v2340 = vunpack.c.l.b16 %v2042
    %v2341 = vunpack.c.h.b16 %v2042
    %v2342 = vunpack.c.l.b16 %v2043
    %v2343 = vunpack.c.l.b16 %v2044
    %v2344 = vunpack.c.h.b16 %v2044
    %v2345 = vunpack.c.l.b16 %v2045
    %v2346 = vunpack.c.l.b16 %v2046
    %v2347 = vunpack.c.h.b16 %v2046
    %v2348 = vunpack.c.l.b16 %v2047
    %v2349 = vunpack.c.l.b16 %v2048
    %v2350 = vunpack.c.h.b16 %v2048
    %v2351 = vunpack.c.l.b16 %v2049
    %v2352 = vunpack.c.l.b16 %v2050
    %v2353 = vunpack.c.h.b16 %v2050
    %v2354 = vunpack.c.l.b16 %v2051
    %v2355 = vunpack.c.l.b16 %v2052
    %v2356 = vunpack.c.h.b16 %v2052
    %v2357 = vunpack.c.l.b16 %v2053
    %v2358 = vunpack.c.l.b16 %v2054
    %v2359 = vunpack.c.h.b16 %v2054
    %v2360 = vunpack.c.l.b16 %v2055
    %v2361 = vunpack.c.l.b16 %v2056
    %v2362 = vunpack.c.h.b16 %v2056
    %v2363 = vunpack.c.l.b16 %v2057
    %v2364 = vunpack.c.l.b16 %v2058
    %v2365 = vunpack.c.h.b16 %v2058
    %v2366 = vunpack.c.l.b16 %v2059
    %v2367 = vunpack.c.l.b16 %v2060
    %v2368 = vunpack.c.h.b16 %v2060
    %v2369 = vunpack.c.l.b16 %v2061
    %v2370 = vunpack.c.l.b16 %v2062
    %v2371 = vunpack.c.h.b16 %v2062
    %v2372 = vunpack.c.l.b16 %v2063
    %v2373 = vunpack.c.l.b16 %v2064
    %v2374 = vunpack.c.h.b16 %v2064
    %v2375 = vunpack.c.l.b16 %v2065
    %v2376 = vunpack.c.l.b16 %v2066
    %v2377 = vunpack.c.h.b16 %v2066
    %v2378 = vunpack.c.l.b16 %v2067
    %v2379 = vunpack.c.l.b16 %v2068
    %v2380 = vunpack.c.h.b16 %v2068
    %v2381 = vunpack.c.l.b16 %v2069
    %v2382 = vunpack.c.l.b16 %v2070
    %v2383 = vunpack.c.h.b16 %v2070
    %v2384 = vunpack.c.l.b16 %v2071
    %v2385 = vunpack.c.l.b16 %v2072
    %v2386 = vunpack.c.h.b16 %v2072
    %v2387 = vunpack.c.l.b16 %v2073
    %v2388 = vunpack.c.l.b16 %v2074
    %v2389 = vunpack.c.h.b16 %v2074
    %v2390 = vunpack.c.l.b16 %v2075
    %v2391 = vunpack.c.l.b16 %v2076
    %v2392 = vunpack.c.h.b16 %v2076
    %v2393 = vunpack.c.l.b16 %v2077
    %v2394 = vunpack.c.l.b16 %v2078
    %v2395 = vunpack.c.h.b16 %v2078
    %v2396 = vunpack.c.l.b16 %v2079
    %v2397 = vunpack.c.l.b16 %v2080
    %v2398 = vunpack.c.h.b16 %v2080
    %v2399 = vunpack.c.l.b16 %v2081
    %v2400 = vunpack.c.l.b16 %v2082
    %v2401 = vunpack.c.h.b16 %v2082
    %v2402 = vunpack.c.l.b16 %v2083
    %v2403 = vunpack.c.l.b16 %v2084
    %v2404 = vunpack.c.h.b16 %v2084
    %v2405 = vunpack.c.l.b16 %v2085
    %v2406 = vunpack.c.l.b16 %v2086
    %v2407 = vunpack.c.h.b16 %v2086
    %v2408 = vunpack.c.l.b16 %v2087
    %v2409 = vunpack.c.l.b16 %v2088
    %v2410 = vunpack.c.h.b16 %v2088
    %v2411 = vunpack.c.l.b16 %v2089
    %v2412 = vunpack.c.l.b16 %v2090
    %v2413 = vunpack.c.h.b16 %v2090
    %v2414 = vunpack.c.l.b16 %v2091
    %v2415 = vunpack.c.l.b16 %v2092
    %v2416 = vunpack.c.h.b16 %v2092
    %v2417 = vunpack.c.l.b16 %v2093
    %v2418 = vunpack.c.l.b16 %v2094
    %v2419 = vunpack.c.h.b16 %v2094
    %v2420 = vunpack.c.l.b16 %v2095
    %v2421 = vunpack.c.l.b16 %v2096
    %v2422 = vunpack.c.h.b16 %v2096
    %v2423 = vunpack.c.l.b16 %v2097
    %v2424 = vunpack.c.l.b16 %v2098
    %v2425 = vunpack.c.h.b16 %v2098
    %v2426 = vunpack.c.l.b16 %v2099
    %v2427 = vunpack.c.l.b16 %v2100
    %v2428 = vunpack.c.h.b16 %v2100
    %v2429 = vunpack.c.l.b16 %v2101
    %v2430 = vunpack.c.l.b16 %v2102
    %v2431 = vunpack.c.h.b16 %v2102
    %v2432 = vunpack.c.l.b16 %v2103
    %v2433 = vunpack.c.l.b16 %v2104
    %v2434 = vunpack.c.h.b16 %v2104
    %v2435 = vunpack.c.l.b16 %v2105
    %v2436 = vunpack.c.l.b16 %v2106
    %v2437 = vunpack.c.h.b16 %v2106
    %v2438 = vunpack.c.l.b16 %v2107
    %v2439 = vunpack.c.l.b16 %v2108
    %v2440 = vunpack.c.h.b16 %v2108
    %v2441 = vunpack.c.l.b16 %v2109
    %v2442 = vunpack.c.l.b16 %v2110
    %v2443 = vunpack.c.h.b16 %v2110
    %v2444 = vunpack.c.l.b16 %v2111
    %v2445 = vunpack.c.l.b16 %v2112
    %v2446 = vunpack.c.h.b16 %v2112
    %v2447 = vunpack.c.l.b16 %v2113
    %v2448 = vunpack.c.l.b16 %v2114
    %v2449 = vunpack.c.h.b16 %v2114
    %v2450 = vunpack.c.l.b16 %v2115
    %v2451 = vunpack.c.l.b16 %v2116
    %v2452 = vunpack.c.h.b16 %v2116
    %v2453 = vunpack.c.l.b16 %v2117
    %v2454 = vunpack.c.l.b16 %v2118
    %v2455 = vunpack.c.h.b16 %v2118
    %v2456 = vunpack.c.l.b16 %v2119
    %v2457 = vunpack.c.l.b16 %v2120
    %v2458 = vunpack.c.h.b16 %v2120
    %v2459 = vunpack.c.l.b16 %v2121
    %v2460 = vunpack.c.l.b16 %v2122
    %v2461 = vunpack.c.h.b16 %v2122
    %v2462 = vunpack.c.l.b16 %v2123
    %v2463 = vunpack.c.l.b16 %v2124
    %v2464 = vunpack.c.h.b16 %v2124
    %v2465 = vunpack.c.l.b16 %v2125
    %v2466 = vunpack.c.l.b16 %v2126
    %v2467 = vunpack.c.h.b16 %v2126
    %v2468 = vunpack.c.l.b16 %v2127
    %v2469 = vunpack.c.l.b16 %v2128
    %v2470 = vunpack.c.h.b16 %v2128
    %v2471 = vunpack.c.l.b16 %v2129
    %v2472 = vunpack.c.l.b16 %v2130
    %v2473 = vunpack.c.h.b16 %v2130
    %v2474 = vunpack.c.l.b16 %v2131
    %v2475 = vunpack.c.l.b16 %v2132
    %v2476 = vunpack.c.h.b16 %v2132
    %v2477 = vunpack.c.l.b16 %v2133
    %v2478 = vunpack.c.l.b16 %v2134
    %v2479 = vunpack.c.h.b16 %v2134
    %v2480 = vunpack.c.l.b16 %v2135
    %v2481 = vunpack.c.l.b16 %v2136
    %v2482 = vunpack.c.h.b16 %v2136
    %v2483 = vunpack.c.l.b16 %v2137
    %v2484 = vunpack.c.l.b16 %v2138
    %v2485 = vunpack.c.h.b16 %v2138
    %v2486 = vunpack.c.l.b16 %v2139
    %v2487 = vunpack.c.l.b16 %v2140
    %v2488 = vunpack.c.h.b16 %v2140
    %v2489 = vunpack.c.l.b16 %v2141
    %v2490 = vunpack.c.l.b16 %v2142
    %v2491 = vunpack.c.h.b16 %v2142
    %v2492 = vunpack.c.l.b16 %v2143
    %v2493 = vunpack.c.l.b16 %v2144
    %v2494 = vunpack.c.h.b16 %v2144
    %v2495 = vunpack.c.l.b16 %v2145
    %v2496 = vunpack.c.l.b16 %v2146
    %v2497 = vunpack.c.h.b16 %v2146
    %v2498 = vunpack.c.l.b16 %v2147
    %v2499 = vunpack.c.l.b16 %v2148
    %v2500 = vunpack.c.h.b16 %v2148
    %v2501 = vunpack.c.l.b16 %v2149
    %v2502 = vunpack.c.l.b16 %v2150
    %v2503 = vunpack.c.h.b16 %v2150
    %v2504 = vunpack.c.l.b16 %v2151
    %v2505 = vunpack.c.l.b16 %v2152
    %v2506 = vunpack.c.h.b16 %v2152
    %v2507 = vunpack.c.l.b16 %v2153
    %v2508 = vunpack.c.l.b16 %v2154
    %v2509 = vunpack.c.h.b16 %v2154
    %v2510 = vunpack.c.l.b16 %v2155
    %v2511 = vunpack.c.l.b16 %v2156
    %v2512 = vunpack.c.h.b16 %v2156
    %v2513 = vunpack.c.l.b16 %v2157
    %v2514 = vpack.c.b16 %v2325, %v2322
    %v2515 = vpack.c.b16 %v2326, %v2323
    %v2516 = vpack.c.b16 %v2327, %v2324
    %v2517 = vpack.c.b16 %v2331, %v2328
    %v2518 = vpack.c.b16 %v2332, %v2329
    %v2519 = vpack.c.b16 %v2333, %v2330
    %v2520 = vpack.c.b16 %v2337, %v2334
    %v2521 = vpack.c.b16 %v2338, %v2335
    %v2522 = vpack.c.b16 %v2339, %v2336
    %v2523 = vpack.c.b16 %v2343, %v2340
    %v2524 = vpack.c.b16 %v2344, %v2341
    %v2525 = vpack.c.b16 %v2345, %v2342
    %v2526 = vpack.c.b16 %v2349, %v2346
    %v2527 = vpack.c.b16 %v2350, %v2347
    %v2528 = vpack.c.b16 %v2351, %v2348
    %v2529 = vpack.c.b16 %v2355, %v2352
    %v2530 = vpack.c.b16 %v2356, %v2353
    %v2531 = vpack.c.b16 %v2357, %v2354
    %v2532 = vpack.c.b16 %v2361, %v2358
    %v2533 = vpack.c.b16 %v2362, %v2359
    %v2534 = vpack.c.b16 %v2363, %v2360
    %v2535 = vpack.c.b16 %v2367, %v2364
    %v2536 = vpack.c.b16 %v2368, %v2365
    %v2537 = vpack.c.b16 %v2369, %v2366
    %v2538 = vpack.c.b16 %v2373, %v2370
    %v2539 = vpack.c.b16 %v2374, %v2371
    %v2540 = vpack.c.b16 %v2375, %v2372
    %v2541 = vpack.c.b16 %v2379, %v2376
    %v2542 = vpack.c.b16 %v2380, %v2377
    %v2543 = vpack.c.b16 %v2381, %v2378
    %v2544 = vpack.c.b16 %v2385, %v2382
    %v2545 = vpack.c.b16 %v2386, %v2383
    %v2546 = vpack.c.b16 %v2387, %v2384
    %v2547 = vpack.c.b16 %v2391, %v2388
    %v2548 = vpack.c.b16 %v2392, %v2389
    %v2549 = vpack.c.b16 %v2393, %v2390
    %v2550 = vpack.c.b16 %v2397, %v2394
    %v2551 = vpack.c.b16 %v2398, %v2395
    %v2552 = vpack.c.b16 %v2399, %v2396
    %v2553 = vpack.c.b16 %v2403, %v2400
    %v2554 = vpack.c.b16 %v2404, %v2401
    %v2555 = vpack.c.b16 %v2405, %v2402
    %v2556 = vpack.c.b16 %v2409, %v2406
    %v2557 = vpack.c.b16 %v2410, %v2407
    %v2558 = vpack.c.b16 %v2411, %v2408
    %v2559 = vpack.c.b16 %v2415, %v2412
    %v2560 = vpack.c.b16 %v2416, %v2413
    %v2561 = vpack.c.b16 %v2417, %v2414
    %v2562 = vpack.c.b16 %v2421, %v2418
    %v2563 = vpack.c.b16 %v2422, %v2419
    %v2564 = vpack.c.b16 %v2423, %v2420
    %v2565 = vpack.c.b16 %v2427, %v2424
    %v2566 = vpack.c.b16 %v2428, %v2425
    %v2567 = vpack.c.b16 %v2429, %v2426
    %v2568 = vpack.c.b16 %v2433, %v2430
    %v2569 = vpack.c.b16 %v2434, %v2431
    %v2570 = vpack.c.b16 %v2435, %v2432
    %v2571 = vpack.c.b16 %v2439, %v2436
    %v2572 = vpack.c.b16 %v2440, %v2437
    %v2573 = vpack.c.b16 %v2441, %v2438
    %v2574 = vpack.c.b16 %v2445, %v2442
    %v2575 = vpack.c.b16 %v2446, %v2443
    %v2576 = vpack.c.b16 %v2447, %v2444
    %v2577 = vpack.c.b16 %v2451, %v2448
    %v2578 = vpack.c.b16 %v2452, %v2449
    %v2579 = vpack.c.b16 %v2453, %v2450
    %v2580 = vpack.c.b16 %v2457, %v2454
    %v2581 = vpack.c.b16 %v2458, %v2455
    %v2582 = vpack.c.b16 %v2459, %v2456
    %v2583 = vpack.c.b16 %v2463, %v2460
    %v2584 = vpack.c.b16 %v2464, %v2461
    %v2585 = vpack.c.b16 %v2465, %v2462
    %v2586 = vpack.c.b16 %v2469, %v2466
    %v2587 = vpack.c.b16 %v2470, %v2467
    %v2588 = vpack.c.b16 %v2471, %v2468
    %v2589 = vpack.c.b16 %v2475, %v2472
    %v2590 = vpack.c.b16 %v2476, %v2473
    %v2591 = vpack.c.b16 %v2477, %v2474
    %v2592 = vpack.c.b16 %v2481, %v2478
    %v2593 = vpack.c.b16 %v2482, %v2479
    %v2594 = vpack.c.b16 %v2483, %v2480
    %v2595 = vpack.c.b16 %v2487, %v2484
    %v2596 = vpack.c.b16 %v2488, %v2485
    %v2597 = vpack.c.b16 %v2489, %v2486
    %v2598 = vpack.c.b16 %v2493, %v2490
    %v2599 = vpack.c.b16 %v2494, %v2491
    %v2600 = vpack.c.b16 %v2495, %v2492
    %v2601 = vpack.c.b16 %v2499, %v2496
    %v2602 = vpack.c.b16 %v2500, %v2497
    %v2603 = vpack.c.b16 %v2501, %v2498
    %v2604 = vpack.c.b16 %v2505, %v2502
    %v2605 = vpack.c.b16 %v2506, %v2503
    %v2606 = vpack.c.b16 %v2507, %v2504
    %v2607 = vpack.c.b16 %v2511, %v2508
    %v2608 = vpack.c.b16 %v2512, %v2509
    %v2609 = vpack.c.b16 %v2513, %v2510
    %2706 = vmatprep.subr.bf16.mxu0 %v2515
    %2707 = vmatpush1.bf16.msra.mxu0 %v2514
    %2708 = vmatprep.subr.bf16.mxu0 %v2518
    %2709 = vmatpush1.bf16.msra.mxu0 %v2517
    %2710 = vmatprep.subr.bf16.mxu0 %v2521
    %2711 = vmatpush1.bf16.msra.mxu0 %v2520
    %2712 = vmatprep.subr.bf16.mxu0 %v2524
    %2713 = vmatpush1.bf16.msra.mxu0 %v2523
    %2714 = vmatprep.subr.bf16.mxu0 %v2527
    %2715 = vmatpush1.bf16.msra.mxu0 %v2526
    %2716 = vmatprep.subr.bf16.mxu0 %v2530
    %2717 = vmatpush1.bf16.msra.mxu0 %v2529
    %2718 = vmatprep.subr.bf16.mxu0 %v2533
    %2719 = vmatpush1.bf16.msra.mxu0 %v2532
    %2720 = vmatprep.subr.bf16.mxu0 %v2536
    %2721 = vmatpush1.bf16.msra.mxu0 %v2535
    %2722 = vmatprep.subr.bf16.mxu0 %v2539
    %2723 = vmatpush1.bf16.msra.mxu0 %v2538
    %2724 = vmatprep.subr.bf16.mxu0 %v2542
    %2725 = vmatpush1.bf16.msra.mxu0 %v2541
    %2726 = vmatprep.subr.bf16.mxu0 %v2545
    %2727 = vmatpush1.bf16.msra.mxu0 %v2544
    %2728 = vmatprep.subr.bf16.mxu0 %v2548
    %2729 = vmatpush1.bf16.msra.mxu0 %v2547
    %2730 = vmatprep.subr.bf16.mxu0 %v2551
    %2731 = vmatpush1.bf16.msra.mxu0 %v2550
    %2732 = vmatprep.subr.bf16.mxu0 %v2554
    %2733 = vmatpush1.bf16.msra.mxu0 %v2553
    %2734 = vmatprep.subr.bf16.mxu0 %v2557
    %2735 = vmatpush1.bf16.msra.mxu0 %v2556
    %2736 = vmatprep.subr.bf16.mxu0 %v2560
    %2737 = vmatpush1.bf16.msra.mxu0 %v2559
    %2738 = vmatprep.mubr.bf16.mxu0 %v2027
    %2739 = vmatmul.mubr.bf16.gmra.mrb[0].mxu0 %v2026
    %v2740 = vpop.f32.mrb[0].mxu0
    %v2741 = vadd.f32 %v2188, %v2740
    %v2742 = vpop.f32.mrb[0].mxu0
    %v2743 = vadd.f32 %v2189, %v2742
    %v2744 = vpop.f32.mrb[0].mxu0
    %v2745 = vadd.f32 %v2191, %v2744
    %v2746 = vpop.f32.mrb[0].mxu0
    %v2747 = vadd.f32 %v2192, %v2746
    %2748 = vdwg.mxu0
    %2749 = vmatprep.subr.bf16.mxu0 %v2563
    %2750 = vmatpush1.bf16.msra.mxu0 %v2562
    %2751 = vmatprep.subr.bf16.mxu0 %v2566
    %2752 = vmatpush1.bf16.msra.mxu0 %v2565
    %2753 = vmatprep.subr.bf16.mxu0 %v2569
    %2754 = vmatpush1.bf16.msra.mxu0 %v2568
    %2755 = vmatprep.subr.bf16.mxu0 %v2572
    %2756 = vmatpush1.bf16.msra.mxu0 %v2571
    %2757 = vmatprep.subr.bf16.mxu0 %v2575
    %2758 = vmatpush1.bf16.msra.mxu0 %v2574
    %2759 = vmatprep.subr.bf16.mxu0 %v2578
    %2760 = vmatpush1.bf16.msra.mxu0 %v2577
    %2761 = vmatprep.subr.bf16.mxu0 %v2581
    %2762 = vmatpush1.bf16.msra.mxu0 %v2580
    %2763 = vmatprep.subr.bf16.mxu0 %v2584
    %2764 = vmatpush1.bf16.msra.mxu0 %v2583
    %2765 = vmatprep.subr.bf16.mxu0 %v2587
    %2766 = vmatpush1.bf16.msra.mxu0 %v2586
    %2767 = vmatprep.subr.bf16.mxu0 %v2590
    %2768 = vmatpush1.bf16.msra.mxu0 %v2589
    %2769 = vmatprep.subr.bf16.mxu0 %v2593
    %2770 = vmatpush1.bf16.msra.mxu0 %v2592
    %2771 = vmatprep.subr.bf16.mxu0 %v2596
    %2772 = vmatpush1.bf16.msra.mxu0 %v2595
    %2773 = vmatprep.subr.bf16.mxu0 %v2599
    %2774 = vmatpush1.bf16.msra.mxu0 %v2598
    %2775 = vmatprep.subr.bf16.mxu0 %v2602
    %2776 = vmatpush1.bf16.msra.mxu0 %v2601
    %2777 = vmatprep.subr.bf16.mxu0 %v2605
    %2778 = vmatpush1.bf16.msra.mxu0 %v2604
    %2779 = vmatprep.subr.bf16.mxu0 %v2608
    %2780 = vmatpush1.bf16.msra.mxu0 %v2607
    %2781 = vmatprep.mubr.bf16.mxu0 %v2029
    %2782 = vmatmul.mubr.bf16.gmra.mrb[0].mxu0 %v2028
    %v2783 = vpop.f32.mrb[0].mxu0
    %v2784 = vadd.f32 %v2741, %v2783
    %v2785 = vpop.f32.mrb[0].mxu0
    %v2786 = vadd.f32 %v2743, %v2785
    %v2787 = vpop.f32.mrb[0].mxu0
    %v2788 = vadd.f32 %v2745, %v2787
    %v2789 = vpop.f32.mrb[0].mxu0
    %v2790 = vadd.f32 %v2747, %v2789
    %2791 = vdwg.mxu0
    %2792 = vmatprep.subr.bf16.mxu0 0
    %2793 = vmatpush1.bf16.msra.mxu0 %v2516
    %2794 = vmatprep.subr.bf16.mxu0 0
    %2795 = vmatpush1.bf16.msra.mxu0 %v2519
    %2796 = vmatprep.subr.bf16.mxu0 0
    %2797 = vmatpush1.bf16.msra.mxu0 %v2522
    %2798 = vmatprep.subr.bf16.mxu0 0
    %2799 = vmatpush1.bf16.msra.mxu0 %v2525
    %2800 = vmatprep.subr.bf16.mxu0 0
    %2801 = vmatpush1.bf16.msra.mxu0 %v2528
    %2802 = vmatprep.subr.bf16.mxu0 0
    %2803 = vmatpush1.bf16.msra.mxu0 %v2531
    %2804 = vmatprep.subr.bf16.mxu0 0
    %2805 = vmatpush1.bf16.msra.mxu0 %v2534
    %2806 = vmatprep.subr.bf16.mxu0 0
    %2807 = vmatpush1.bf16.msra.mxu0 %v2537
    %2808 = vmatprep.subr.bf16.mxu0 0
    %2809 = vmatpush1.bf16.msra.mxu0 %v2540
    %2810 = vmatprep.subr.bf16.mxu0 0
    %2811 = vmatpush1.bf16.msra.mxu0 %v2543
    %2812 = vmatprep.subr.bf16.mxu0 0
    %2813 = vmatpush1.bf16.msra.mxu0 %v2546
    %2814 = vmatprep.subr.bf16.mxu0 0
    %2815 = vmatpush1.bf16.msra.mxu0 %v2549
    %2816 = vmatprep.subr.bf16.mxu0 0
    %2817 = vmatpush1.bf16.msra.mxu0 %v2552
    %2818 = vmatprep.subr.bf16.mxu0 0
    %2819 = vmatpush1.bf16.msra.mxu0 %v2555
    %2820 = vmatprep.subr.bf16.mxu0 0
    %2821 = vmatpush1.bf16.msra.mxu0 %v2558
    %2822 = vmatprep.subr.bf16.mxu0 0
    %2823 = vmatpush1.bf16.msra.mxu0 %v2561
    %2824 = vmatprep.mubr.bf16.mxu0 %v2027
    %2825 = vmatmul.mubr.bf16.gmra.mrb[0].mxu0 %v2026
    %v2826 = vpop.f32.mrb[0].mxu0
    %v2827 = vadd.f32 %v2190, %v2826
    %v2828 = vpop.f32.mrb[0].mxu0
    %v2829 = vpop.f32.mrb[0].mxu0
    %v2830 = vadd.f32 %v2193, %v2829
    %v2831 = vpop.f32.mrb[0].mxu0
    %2832 = vdwg.mxu0
    %2833 = vmatprep.subr.bf16.mxu0 0
    %2834 = vmatpush1.bf16.msra.mxu0 %v2564
    %2835 = vmatprep.subr.bf16.mxu0 0
    %2836 = vmatpush1.bf16.msra.mxu0 %v2567
    %2837 = vmatprep.subr.bf16.mxu0 0
    %2838 = vmatpush1.bf16.msra.mxu0 %v2570
    %2839 = vmatprep.subr.bf16.mxu0 0
    %2840 = vmatpush1.bf16.msra.mxu0 %v2573
    %2841 = vmatprep.subr.bf16.mxu0 0
    %2842 = vmatpush1.bf16.msra.mxu0 %v2576
    %2843 = vmatprep.subr.bf16.mxu0 0
    %2844 = vmatpush1.bf16.msra.mxu0 %v2579
    %2845 = vmatprep.subr.bf16.mxu0 0
    %2846 = vmatpush1.bf16.msra.mxu0 %v2582
    %2847 = vmatprep.subr.bf16.mxu0 0
    %2848 = vmatpush1.bf16.msra.mxu0 %v2585
    %2849 = vmatprep.subr.bf16.mxu0 0
    %2850 = vmatpush1.bf16.msra.mxu0 %v2588
    %2851 = vmatprep.subr.bf16.mxu0 0
    %2852 = vmatpush1.bf16.msra.mxu0 %v2591
    %2853 = vmatprep.subr.bf16.mxu0 0
    %2854 = vmatpush1.bf16.msra.mxu0 %v2594
    %2855 = vmatprep.subr.bf16.mxu0 0
    %2856 = vmatpush1.bf16.msra.mxu0 %v2597
    %2857 = vmatprep.subr.bf16.mxu0 0
    %2858 = vmatpush1.bf16.msra.mxu0 %v2600
    %2859 = vmatprep.subr.bf16.mxu0 0
    %2860 = vmatpush1.bf16.msra.mxu0 %v2603
    %2861 = vmatprep.subr.bf16.mxu0 0
    %2862 = vmatpush1.bf16.msra.mxu0 %v2606
    %2863 = vmatprep.subr.bf16.mxu0 0
    %2864 = vmatpush1.bf16.msra.mxu0 %v2609
    %2865 = vmatprep.mubr.bf16.mxu0 %v2029
    %2866 = vmatmul.mubr.bf16.gmra.mrb[0].mxu0 %v2028
    %v2867 = vpop.f32.mrb[0].mxu0
    %v2868 = vadd.f32 %v2827, %v2867
    %v2869 = vpop.f32.mrb[0].mxu0
    %v2870 = vpop.f32.mrb[0].mxu0
    %v2871 = vadd.f32 %v2830, %v2870
    %v2872 = vpop.f32.mrb[0].mxu0
    %2873 = vdwg.mxu0
    %s2874 = scalar_lea.vmem %s4, 3
    %v2875 = vld [vmem:[%s2874] ss:$8 sm:$0x7]
    %2876 = vset.pattern.permute.xlu0 1
    %2877 = vperm.xlu0 %2876, %v2158
    %v2878 = vpop.permute.xlu0 %2877
    %2880 = vset.pattern.permute.xlu0 1
    %2881 = vperm.xlu0 %2880, %v2159
    %v2882 = vpop.permute.xlu0 %2881
    %v2885 = vlaneseq
    %v2886 = vshrl.u32 %v2885, 7
    %v2887 = vsub.s32 0, %v2886
    %v2888 = vrot.slane %v2875, %v2887
    %v2889 = vlaneseq
    %v2890 = vshrl.u32 %v2889, 7
    %v2891 = vsub.s32 1, %v2890
    %v2892 = vrot.slane %v2875, %v2891
    %v2893 = vlaneseq
    %v2894 = vshrl.u32 %v2893, 7
    %v2895 = vsub.s32 2, %v2894
    %v2896 = vrot.slane %v2875, %v2895
    %v2900 = vmul.f32 %v2878, %v2888
    %v2901 = vmul.f32 %v2878, %v2892
    %v2902 = vmul.f32 %v2878, %v2896
    %v2903 = vmul.f32 %v2882, %v2888
    %v2904 = vmul.f32 %v2882, %v2892
    %v2905 = vmul.f32 %v2882, %v2896
    %v2906 = vadd.f32 %v2784, %v2900
    %v2907 = vadd.f32 %v2786, %v2901
    %v2908 = vadd.f32 %v2868, %v2902
    %v2909 = vadd.f32 %v2788, %v2903
    %v2910 = vadd.f32 %v2790, %v2904
    %v2911 = vadd.f32 %v2871, %v2905
    %v2913 = vlaneseq
    %v2914 = vshrl.u32 %v2913, 7
    %v2915 = vsub.s32 0, %v2914
    %v2916 = vrot.slane %v65, %v2915
    %v2917 = vlaneseq
    %v2918 = vshrl.u32 %v2917, 7
    %v2919 = vsub.s32 1, %v2918
    %v2920 = vrot.slane %v65, %v2919
    %v2921 = vlaneseq
    %v2922 = vshrl.u32 %v2921, 7
    %v2923 = vsub.s32 2, %v2922
    %v2924 = vrot.slane %v65, %v2923
    %v2928 = vadd.f32 %v2906, %v2916
    %v2929 = vadd.f32 %v2907, %v2920
    %v2930 = vadd.f32 %v2908, %v2924
    %v2931 = vadd.f32 %v2909, %v2916
    %v2932 = vadd.f32 %v2910, %v2920
    %v2933 = vadd.f32 %v2911, %v2924
    %v2934 = vmax.f32 %v2928, 0.0
    %v2935 = vmax.f32 %v2929, 0.0
    %v2936 = vmax.f32 %v2930, 0.0
    %v2937 = vmax.f32 %v2931, 0.0
    %v2938 = vmax.f32 %v2932, 0.0
    %v2939 = vmax.f32 %v2933, 0.0
    %v2941 = vlaneseq
    %v2942 = vshrl.u32 %v2941, 7
    %v2943 = vsub.s32 0, %v2942
    %v2944 = vrot.slane %v67, %v2943
    %v2945 = vlaneseq
    %v2946 = vshrl.u32 %v2945, 7
    %v2947 = vsub.s32 1, %v2946
    %v2948 = vrot.slane %v67, %v2947
    %v2949 = vlaneseq
    %v2950 = vshrl.u32 %v2949, 7
    %v2951 = vsub.s32 2, %v2950
    %v2952 = vrot.slane %v67, %v2951
    %v2956 = vmul.f32 %v2934, %v2944
    %v2957 = vmul.f32 %v2935, %v2948
    %v2958 = vmul.f32 %v2936, %v2952
    %v2959 = vmul.f32 %v2937, %v2944
    %v2960 = vmul.f32 %v2938, %v2948
    %v2961 = vmul.f32 %v2939, %v2952
    %v2962 = vadd.f32 %v2956, %v2957
    %v2963 = vadd.f32 %v2962, %v2958
    %2964 = vadd.xlane.f32.xlu0 %v2963
    %v2965 = vpop.xlane.xlu0 %2964
    %v2966 = vadd.f32 %v2959, %v2960
    %v2967 = vadd.f32 %v2966, %v2961
    %2968 = vadd.xlane.f32.xlu0 %v2967
    %v2969 = vpop.xlane.xlu0 %2968
    %2971 = vset.pattern.permute.xlu0 0
    %2972 = vperm.xlu0 %2971, %v68
    %v2973 = vpop.permute.xlu0 %2972
    %v2975 = vadd.f32 %v2965, %v2973
    %v2976 = vadd.f32 %v2969, %v2973
    %v2979 = vlaneseq
    %v2980 = vand.u32 %v2979, 127
    %v2981 = vlaneseq
    %v2982 = vshrl.u32 %v2981, 7
    %v2983 = vsub.s32 %v2980, %v2982
    %v2984 = vrot.slane %v2975, %v2983
    %v2985 = vadd.s32 %v2980, 4294967288
    %v2986 = vlaneseq
    %v2987 = vshrl.u32 %v2986, 7
    %v2988 = vsub.s32 %v2985, %v2987
    %v2989 = vrot.slane %v2976, %v2988
    %vm2990 = vcmask 130112
    %v2991 = vsel %vm2990, %v2989, %v2984
    %vm2993 = vcmask 122880
    %2994 = vst.msk [vmem:[#allocation8] sm:$0x1] %vm2993, %v2991
    // Predicated region
    $region34: #{tpu_custom_call.1} parent=1 // pred_check
      _
    $region35: #{tpu_custom_call.1} parent=1 // pred_check_branch
      %2996 = sbr.rel (0) target = $region37
    $region36: #{tpu_custom_call.1} parent=1 // pred_region
      %s2998 = ssub.s32 16, 16
      %2999 = vsyncadd [#allocation4], %s2998
      %s3001 = sshll.u32 [#allocation8], 4
      %s3002 = int_to_ptr.vmem [resolvable:$true] %s3001
      %3004 = dma.vmem_to_hbm [thread:$0]  %s3002, 16, %s5, [#allocation4]
    $region37: #{tpu_custom_call.1} parent=1 // pred_fallthru
      _
    // Predicated region
    $region38: #{tpu_custom_call.1} parent=1 // pred_check
      _
    $region39: #{tpu_custom_call.1} parent=1 // pred_check_branch
      %3006 = sbr.rel (0) target = $region41
    $region40: #{tpu_custom_call.1} parent=1 // pred_region
      %3007 = dma.done [#allocation4], 16
    $region41: #{tpu_custom_call.1} parent=1 // pred_fallthru
      _
    %3008 = vsyncpa [#allocation3], 1
    %3009 = vsyncpa [#allocation6], 1
    %3010 = vsyncpa [#allocation4], 1

</llo_original>
